<compile_context>
chip_gen: v7x
topology: tpu7x:2x2x1
jax: 0.10.0
libtpu: 0.0.40
codegen_flags: <defaults>
</compile_context>

<pallas_src>
import functools

import jax
import jax.numpy as jnp
from jax import lax
from jax.experimental import pallas as pl
from jax.experimental.pallas import tpu as pltpu


def _phnvwd2sem_kernel(x_ref, w1i_ref, w1h_ref, w2i_ref, w2h_ref,
                       out_ref, g1_ref, *, T, Bp, H1, H2):
    """Whole-sequence stacked-GRU forward, everything VMEM-resident.

    x_ref   : (T*Bp, IN)   bf16, time folded into the sublane axis
    w1i_ref : (IN, 3*H1)   bf16, fused gate columns [r|z|n]
    w1h_ref : (H1, 3*H1)   bf16
    w2i_ref : (H1, 3*H2)   bf16
    w2h_ref : (H2, 3*H2)   bf16
    out_ref : (T*Bp, OUTW) f32 packed slab: [0:H1)=y1, [H1:H1+H2)=y2,
              [H1+H2:H1+2*H2)=sigmoid(y2), rest zero.
    g1_ref  : (T*Bp, 3*H1) f32 scratch: layer-1 input projections (all steps).
    """
    f32 = jnp.float32
    bf16 = jnp.bfloat16

    # Deterministic contents for the unused tail lanes of the packed slab.
    out_ref[...] = jnp.zeros_like(out_ref)

    # Layer-1 input projection for ALL timesteps in ONE fused MXU matmul:
    # (T*Bp, IN) @ (IN, 3*H1); 3*H1 = 120 lanes -> a single 128-lane MXU tile
    # replaces three 40-lane pushes.
    g1_ref[...] = jnp.dot(x_ref[...], w1i_ref[...], preferred_element_type=f32)

    # Weights stay resident in vregs across the (unrolled) recurrence.
    w1h = w1h_ref[...]
    w2i = w2i_ref[...]
    w2h = w2h_ref[...]

    def step(t, carry):
        h1, h2 = carry                                        # f32 (Bp,H1),(Bp,H2)
        off = pl.multiple_of(t * Bp, Bp)

        # ----- layer 1: phn_ihid GRU cell -----
        gi1 = g1_ref[pl.ds(off, Bp), :]                       # (Bp, 3*H1)
        gh1 = jnp.dot(h1.astype(bf16), w1h, preferred_element_type=f32)
        r1 = jax.nn.sigmoid(gi1[:, :H1] + gh1[:, :H1])
        z1 = jax.nn.sigmoid(gi1[:, H1:2 * H1] + gh1[:, H1:2 * H1])
        n1 = jnp.tanh(gi1[:, 2 * H1:] + r1 * gh1[:, 2 * H1:])
        h1n = (1.0 - z1) * n1 + z1 * h1                       # PyTorch GRU update
        out_ref[pl.ds(off, Bp), 0:H1] = h1n

        # ----- layer 2: out GRU cell, consumes the fresh layer-1 output -----
        gi2 = jnp.dot(h1n.astype(bf16), w2i, preferred_element_type=f32)
        gh2 = jnp.dot(h2.astype(bf16), w2h, preferred_element_type=f32)
        r2 = jax.nn.sigmoid(gi2[:, :H2] + gh2[:, :H2])
        z2 = jax.nn.sigmoid(gi2[:, H2:2 * H2] + gh2[:, H2:2 * H2])
        n2 = jnp.tanh(gi2[:, 2 * H2:] + r2 * gh2[:, 2 * H2:])
        h2n = (1.0 - z2) * n2 + z2 * h2
        out_ref[pl.ds(off, Bp), H1:H1 + H2] = h2n
        # out_nl (sigmoid) fused into the step: rides the already-active EUP slot.
        out_ref[pl.ds(off, Bp), H1 + H2:H1 + 2 * H2] = jax.nn.sigmoid(h2n)
        return (h1n, h2n)

    lax.fori_loop(0, T, step,
                  (jnp.zeros((Bp, H1), f32), jnp.zeros((Bp, H2), f32)),
                  unroll=True if T <= 16 else 4)


def phnvwd2sem_forward(inp_feat, w1_ih, w1_hh, w2_ih, w2_hh):
    """
    Args:
      inp_feat : (T, B, inp_dim) float32, seq-major (PyTorch nn.GRU default)
      w1_ih    : (3*H1, inp_dim)  phn_ihid weight_ih_l0, gate rows [r|z|n]
      w1_hh    : (3*H1, H1)       phn_ihid weight_hh_l0
      w2_ih    : (3*H2, H1)       out GRU weight_ih_l0
      w2_hh    : (3*H2, H2)       out GRU weight_hh_l0
    Returns:
      (phn_ihid_output (T,B,H1), phn_ihid_states (1,B,H1),
       output (T,B,H2), out_states (1,B,H2), sigmoid_output (T,B,H2))
    """
    T, B, IN = inp_feat.shape
    H1 = w1_hh.shape[1]
    H2 = w2_hh.shape[1]

    # Pad batch to a multiple of 8 (sublane width); padded rows stay exactly 0
    # through both bias-free GRUs and are sliced off afterwards.
    Bp = max(8, ((B + 7) // 8) * 8)
    # Lane-dense packed output width (multiple of 128).
    OUTW = max(128, ((H1 + 2 * H2 + 127) // 128) * 128)

    x = jnp.pad(inp_feat.astype(jnp.float32), ((0, 0), (0, Bp - B), (0, 0)))
    x2d = x.reshape(T * Bp, IN).astype(jnp.bfloat16)

    # PyTorch (3H, D) gate rows [r|z|n]  ->  (D, 3H) fused gate columns so one
    # x @ W matmul yields all three gate pre-activations.
    w1i = w1_ih.T.astype(jnp.bfloat16)   # (IN, 3*H1)
    w1h = w1_hh.T.astype(jnp.bfloat16)   # (H1, 3*H1)
    w2i = w2_ih.T.astype(jnp.bfloat16)   # (H1, 3*H2)
    w2h = w2_hh.T.astype(jnp.bfloat16)   # (H2, 3*H2)

    kernel = functools.partial(_phnvwd2sem_kernel, T=T, Bp=Bp, H1=H1, H2=H2)

    # VMEM guard (v7x: 64 MiB physical): size the scoped limit to the real
    # footprint with ample headroom instead of the default.
    footprint = (x2d.size * 2
                 + (w1i.size + w1h.size + w2i.size + w2h.size) * 2
                 + T * Bp * OUTW * 4
                 + T * Bp * 3 * H1 * 4)
    vmem_limit = int(min(128 * 1024 * 1024, max(4 * footprint, 4 * 1024 * 1024)))

    vmem = pl.BlockSpec(memory_space=pltpu.MemorySpace.VMEM)

    packed = pl.pallas_call(
        kernel,
        out_shape=jax.ShapeDtypeStruct((T * Bp, OUTW), jnp.float32),
        in_specs=[vmem, vmem, vmem, vmem, vmem],
        out_specs=vmem,
        scratch_shapes=[pltpu.VMEM((T * Bp, 3 * H1), jnp.float32)],
        compiler_params=pltpu.CompilerParams(vmem_limit_bytes=vmem_limit),
    )(x2d, w1i, w1h, w2i, w2h)

    packed = packed.reshape(T, Bp, OUTW)
    y1 = packed[:, :B, 0:H1]
    y2 = packed[:, :B, H1:H1 + H2]
    sem = packed[:, :B, H1 + H2:H1 + 2 * H2]
    # Final hidden states = last timestep (1-layer, unidirectional GRU).
    return y1, y1[-1:], y2, y2[-1:], sem


# ---------------- pure-JAX f32 reference (for correctness check) ----------------
def _gru_ref(x, w_ih_t, w_hh_t, H):
    def step(h, xt):
        gi = xt @ w_ih_t
        gh = h @ w_hh_t
        r = jax.nn.sigmoid(gi[:, :H] + gh[:, :H])
        z = jax.nn.sigmoid(gi[:, H:2 * H] + gh[:, H:2 * H])
        n = jnp.tanh(gi[:, 2 * H:] + r * gh[:, 2 * H:])
        h_new = (1.0 - z) * n + z * h
        return h_new, h_new
    h0 = jnp.zeros((x.shape[1], H), jnp.float32)
    hT, ys = lax.scan(step, h0, x)
    return ys, hT[None]


if __name__ == "__main__":
    # Model hyperparameters (small, consistent with the module's __init__)
    phn_dim, sem_dim, vis_dim, nvwdimgs = 16, 8, 8, 2
    phn_ihid_dim = 40
    inp_dim = phn_dim + nvwdimgs * vis_dim        # 32
    out_dim = nvwdimgs * sem_dim                  # 16
    T, B = 8, 2                                   # seq_len, batch

    key = jax.random.PRNGKey(0)
    k_x, k1, k2, k3, k4 = jax.random.split(key, 5)

    # Deterministic synthetic GRU weights, PyTorch layout (3H, D), gate order
    # [r | z | n]; bias=False.
    scale1 = 1.0 / jnp.sqrt(phn_ihid_dim)
    scale2 = 1.0 / jnp.sqrt(out_dim)
    w1_ih = jax.random.uniform(k1, (3 * phn_ihid_dim, inp_dim),
                               minval=-scale1, maxval=scale1, dtype=jnp.float32)
    w1_hh = jax.random.uniform(k2, (3 * phn_ihid_dim, phn_ihid_dim),
                               minval=-scale1, maxval=scale1, dtype=jnp.float32)
    w2_ih = jax.random.uniform(k3, (3 * out_dim, phn_ihid_dim),
                               minval=-scale2, maxval=scale2, dtype=jnp.float32)
    w2_hh = jax.random.uniform(k4, (3 * out_dim, out_dim),
                               minval=-scale2, maxval=scale2, dtype=jnp.float32)

    inp_feat = jax.random.normal(k_x, (T, B, inp_dim), dtype=jnp.float32)

    outs = phnvwd2sem_forward(inp_feat, w1_ih, w1_hh, w2_ih, w2_hh)
    outs = jax.block_until_ready(outs)
    phn_ihid_output, phn_ihid_states, output, out_states, sem = outs

    # Reference check (f32 reference; kernel uses bf16 matmul operands, hence
    # the relaxed tolerance).
    y1_ref, s1_ref = _gru_ref(inp_feat, w1_ih.T, w1_hh.T, phn_ihid_dim)
    y2_ref, s2_ref = _gru_ref(y1_ref, w2_ih.T, w2_hh.T, out_dim)
    sem_ref = jax.nn.sigmoid(y2_ref)

    ATOL, RTOL = 3e-2, 2e-2
    assert jnp.allclose(phn_ihid_output, y1_ref, atol=ATOL, rtol=RTOL)
    assert jnp.allclose(phn_ihid_states, s1_ref, atol=ATOL, rtol=RTOL)
    assert jnp.allclose(output, y2_ref, atol=ATOL, rtol=RTOL)
    assert jnp.allclose(out_states, s2_ref, atol=ATOL, rtol=RTOL)
    assert jnp.allclose(sem, sem_ref, atol=ATOL, rtol=RTOL)

    print("KERNEL_OK")
</pallas_src>

<mosaic_0001>
module attributes {stable_mosaic.version = 11 : i64} {
  func.func @_phnvwd2sem_kernel(%arg0: memref<64x32xbf16, #tpu.memory_space<vmem>>, %arg1: memref<32x120xbf16, #tpu.memory_space<vmem>>, %arg2: memref<40x120xbf16, #tpu.memory_space<vmem>>, %arg3: memref<40x48xbf16, #tpu.memory_space<vmem>>, %arg4: memref<16x48xbf16, #tpu.memory_space<vmem>>, %arg5: memref<64x128xf32, #tpu.memory_space<vmem>>, %arg6: memref<64x120xf32, #tpu.memory_space<vmem>>) attributes {dimension_semantics = [], scalar_prefetch = 0 : i64, scratch_operands = 1 : i64, tpu.core_type = #tpu.core_type<tc>} {
    %cst = arith.constant 0.000000e+00 : f32
    %0 = vector.broadcast %cst : f32 to vector<64x128xf32>
    %c0 = arith.constant 0 : index
    %c0_0 = arith.constant 0 : index
    %1 = vector.load %arg5[%c0, %c0_0] : memref<64x128xf32, #tpu.memory_space<vmem>>, vector<64x128xf32>
    tpu.vector_store %arg5[%c0, %c0_0], %0 {strides = array<i32>} : memref<64x128xf32, #tpu.memory_space<vmem>>, vector<64x128xf32>,
    %c0_1 = arith.constant 0 : index
    %c0_2 = arith.constant 0 : index
    %2 = vector.load %arg0[%c0_1, %c0_2] : memref<64x32xbf16, #tpu.memory_space<vmem>>, vector<64x32xbf16>
    %c0_3 = arith.constant 0 : index
    %c0_4 = arith.constant 0 : index
    %3 = vector.load %arg1[%c0_3, %c0_4] : memref<32x120xbf16, #tpu.memory_space<vmem>>, vector<32x120xbf16>
    %cst_5 = arith.constant dense<0.000000e+00> : vector<64x120xf32>
    %4 = tpu.matmul %2, %3, %cst_5 {dimension_numbers = #tpu.dot_dimension_numbers<[1], [0], [0], [1], [0, 0, 1, 1], [], []>} : vector<64x32xbf16>, vector<32x120xbf16>, vector<64x120xf32> -> vector<64x120xf32>
    %c0_6 = arith.constant 0 : index
    %c0_7 = arith.constant 0 : index
    %5 = vector.load %arg6[%c0_6, %c0_7] : memref<64x120xf32, #tpu.memory_space<vmem>>, vector<64x120xf32>
    tpu.vector_store %arg6[%c0_6, %c0_7], %4 {strides = array<i32>} : memref<64x120xf32, #tpu.memory_space<vmem>>, vector<64x120xf32>,
    %c0_8 = arith.constant 0 : index
    %c0_9 = arith.constant 0 : index
    %6 = vector.load %arg2[%c0_8, %c0_9] : memref<40x120xbf16, #tpu.memory_space<vmem>>, vector<40x120xbf16>
    %c0_10 = arith.constant 0 : index
    %c0_11 = arith.constant 0 : index
    %7 = vector.load %arg3[%c0_10, %c0_11] : memref<40x48xbf16, #tpu.memory_space<vmem>>, vector<40x48xbf16>
    %c0_12 = arith.constant 0 : index
    %c0_13 = arith.constant 0 : index
    %8 = vector.load %arg4[%c0_12, %c0_13] : memref<16x48xbf16, #tpu.memory_space<vmem>>, vector<16x48xbf16>
    %cst_14 = arith.constant 0.000000e+00 : f32
    %9 = vector.broadcast %cst_14 : f32 to vector<8x40xf32>
    %cst_15 = arith.constant 0.000000e+00 : f32
    %10 = vector.broadcast %cst_15 : f32 to vector<8x16xf32>
    %c0_i32 = arith.constant 0 : i32
    %c8_i32 = arith.constant 8 : i32
    %11 = arith.muli %c0_i32, %c8_i32 : i32
    %12 = tpu.assume_multiple %11, 8 : i32
    %13 = arith.index_cast %12 : i32 to index
    %c0_16 = arith.constant 0 : index
    %14 = vector.load %arg6[%13, %c0_16] : memref<64x120xf32, #tpu.memory_space<vmem>>, vector<8x120xf32>
    %15 = arith.truncf %9 : vector<8x40xf32> to vector<8x40xbf16>
    %cst_17 = arith.constant dense<0.000000e+00> : vector<8x120xf32>
    %16 = tpu.matmul %15, %6, %cst_17 {dimension_numbers = #tpu.dot_dimension_numbers<[1], [0], [0], [1], [0, 0, 1, 1], [], []>} : vector<8x40xbf16>, vector<40x120xbf16>, vector<8x120xf32> -> vector<8x120xf32>
    %17 = vector.extract_strided_slice %14 {offsets = [0, 0], sizes = [8, 40], strides = [1, 1]} : vector<8x120xf32> to vector<8x40xf32>
    %18 = vector.extract_strided_slice %16 {offsets = [0, 0], sizes = [8, 40], strides = [1, 1]} : vector<8x120xf32> to vector<8x40xf32>
    %19 = arith.addf %17, %18 : vector<8x40xf32>
    %20 = arith.negf %19 : vector<8x40xf32>
    %21 = math.exp %20 : vector<8x40xf32>
    %cst_18 = arith.constant 1.000000e+00 : f32
    %22 = vector.broadcast %cst_18 : f32 to vector<8x40xf32>
    %23 = arith.addf %22, %21 : vector<8x40xf32>
    %24 = arith.divf %22, %23 : vector<8x40xf32>
    %25 = vector.extract_strided_slice %14 {offsets = [0, 40], sizes = [8, 40], strides = [1, 1]} : vector<8x120xf32> to vector<8x40xf32>
    %26 = vector.extract_strided_slice %16 {offsets = [0, 40], sizes = [8, 40], strides = [1, 1]} : vector<8x120xf32> to vector<8x40xf32>
    %27 = arith.addf %25, %26 : vector<8x40xf32>
    %28 = arith.negf %27 : vector<8x40xf32>
    %29 = math.exp %28 : vector<8x40xf32>
    %cst_19 = arith.constant 1.000000e+00 : f32
    %30 = vector.broadcast %cst_19 : f32 to vector<8x40xf32>
    %31 = arith.addf %30, %29 : vector<8x40xf32>
    %32 = arith.divf %30, %31 : vector<8x40xf32>
    %33 = vector.extract_strided_slice %14 {offsets = [0, 80], sizes = [8, 40], strides = [1, 1]} : vector<8x120xf32> to vector<8x40xf32>
    %34 = vector.extract_strided_slice %16 {offsets = [0, 80], sizes = [8, 40], strides = [1, 1]} : vector<8x120xf32> to vector<8x40xf32>
    %35 = arith.mulf %24, %34 : vector<8x40xf32>
    %36 = arith.addf %33, %35 : vector<8x40xf32>
    %37 = math.tanh %36 : vector<8x40xf32>
    %cst_20 = arith.constant 1.000000e+00 : f32
    %38 = vector.broadcast %cst_20 : f32 to vector<8x40xf32>
    %39 = arith.subf %38, %32 : vector<8x40xf32>
    %40 = arith.mulf %39, %37 : vector<8x40xf32>
    %41 = arith.mulf %32, %9 : vector<8x40xf32>
    %42 = arith.addf %40, %41 : vector<8x40xf32>
    %43 = arith.index_cast %12 : i32 to index
    %c0_21 = arith.constant 0 : index
    %44 = vector.load %arg5[%43, %c0_21] : memref<64x128xf32, #tpu.memory_space<vmem>>, vector<8x40xf32>
    tpu.vector_store %arg5[%43, %c0_21], %42 {strides = array<i32>} : memref<64x128xf32, #tpu.memory_space<vmem>>, vector<8x40xf32>,
    %45 = arith.truncf %42 : vector<8x40xf32> to vector<8x40xbf16>
    %cst_22 = arith.constant dense<0.000000e+00> : vector<8x48xf32>
    %46 = tpu.matmul %45, %7, %cst_22 {dimension_numbers = #tpu.dot_dimension_numbers<[1], [0], [0], [1], [0, 0, 1, 1], [], []>} : vector<8x40xbf16>, vector<40x48xbf16>, vector<8x48xf32> -> vector<8x48xf32>
    %47 = arith.truncf %10 : vector<8x16xf32> to vector<8x16xbf16>
    %cst_23 = arith.constant dense<0.000000e+00> : vector<8x48xf32>
    %48 = tpu.matmul %47, %8, %cst_23 {dimension_numbers = #tpu.dot_dimension_numbers<[1], [0], [0], [1], [0, 0, 1, 1], [], []>} : vector<8x16xbf16>, vector<16x48xbf16>, vector<8x48xf32> -> vector<8x48xf32>
    %49 = vector.extract_strided_slice %46 {offsets = [0, 0], sizes = [8, 16], strides = [1, 1]} : vector<8x48xf32> to vector<8x16xf32>
    %50 = vector.extract_strided_slice %48 {offsets = [0, 0], sizes = [8, 16], strides = [1, 1]} : vector<8x48xf32> to vector<8x16xf32>
    %51 = arith.addf %49, %50 : vector<8x16xf32>
    %52 = arith.negf %51 : vector<8x16xf32>
    %53 = math.exp %52 : vector<8x16xf32>
    %cst_24 = arith.constant 1.000000e+00 : f32
    %54 = vector.broadcast %cst_24 : f32 to vector<8x16xf32>
    %55 = arith.addf %54, %53 : vector<8x16xf32>
    %56 = arith.divf %54, %55 : vector<8x16xf32>
    %57 = vector.extract_strided_slice %46 {offsets = [0, 16], sizes = [8, 16], strides = [1, 1]} : vector<8x48xf32> to vector<8x16xf32>
    %58 = vector.extract_strided_slice %48 {offsets = [0, 16], sizes = [8, 16], strides = [1, 1]} : vector<8x48xf32> to vector<8x16xf32>
    %59 = arith.addf %57, %58 : vector<8x16xf32>
    %60 = arith.negf %59 : vector<8x16xf32>
    %61 = math.exp %60 : vector<8x16xf32>
    %cst_25 = arith.constant 1.000000e+00 : f32
    %62 = vector.broadcast %cst_25 : f32 to vector<8x16xf32>
    %63 = arith.addf %62, %61 : vector<8x16xf32>
    %64 = arith.divf %62, %63 : vector<8x16xf32>
    %65 = vector.extract_strided_slice %46 {offsets = [0, 32], sizes = [8, 16], strides = [1, 1]} : vector<8x48xf32> to vector<8x16xf32>
    %66 = vector.extract_strided_slice %48 {offsets = [0, 32], sizes = [8, 16], strides = [1, 1]} : vector<8x48xf32> to vector<8x16xf32>
    %67 = arith.mulf %56, %66 : vector<8x16xf32>
    %68 = arith.addf %65, %67 : vector<8x16xf32>
    %69 = math.tanh %68 : vector<8x16xf32>
    %cst_26 = arith.constant 1.000000e+00 : f32
    %70 = vector.broadcast %cst_26 : f32 to vector<8x16xf32>
    %71 = arith.subf %70, %64 : vector<8x16xf32>
    %72 = arith.mulf %71, %69 : vector<8x16xf32>
    %73 = arith.mulf %64, %10 : vector<8x16xf32>
    %74 = arith.addf %72, %73 : vector<8x16xf32>
    %75 = arith.index_cast %12 : i32 to index
    %c40 = arith.constant 40 : index
    %76 = vector.load %arg5[%75, %c40] : memref<64x128xf32, #tpu.memory_space<vmem>>, vector<8x16xf32>
    tpu.vector_store %arg5[%75, %c40], %74 {strides = array<i32>} : memref<64x128xf32, #tpu.memory_space<vmem>>, vector<8x16xf32>,
    %77 = arith.negf %74 : vector<8x16xf32>
    %78 = math.exp %77 : vector<8x16xf32>
    %cst_27 = arith.constant 1.000000e+00 : f32
    %79 = vector.broadcast %cst_27 : f32 to vector<8x16xf32>
    %80 = arith.addf %79, %78 : vector<8x16xf32>
    %81 = arith.divf %79, %80 : vector<8x16xf32>
    %82 = arith.index_cast %12 : i32 to index
    %c56 = arith.constant 56 : index
    %83 = vector.load %arg5[%82, %c56] : memref<64x128xf32, #tpu.memory_space<vmem>>, vector<8x16xf32>
    tpu.vector_store %arg5[%82, %c56], %81 {strides = array<i32>} : memref<64x128xf32, #tpu.memory_space<vmem>>, vector<8x16xf32>,
    %c1_i32 = arith.constant 1 : i32
    %c8_i32_28 = arith.constant 8 : i32
    %84 = arith.muli %c1_i32, %c8_i32_28 : i32
    %85 = tpu.assume_multiple %84, 8 : i32
    %86 = arith.index_cast %85 : i32 to index
    %c0_29 = arith.constant 0 : index
    %87 = vector.load %arg6[%86, %c0_29] : memref<64x120xf32, #tpu.memory_space<vmem>>, vector<8x120xf32>
    %88 = arith.truncf %42 : vector<8x40xf32> to vector<8x40xbf16>
    %cst_30 = arith.constant dense<0.000000e+00> : vector<8x120xf32>
    %89 = tpu.matmul %88, %6, %cst_30 {dimension_numbers = #tpu.dot_dimension_numbers<[1], [0], [0], [1], [0, 0, 1, 1], [], []>} : vector<8x40xbf16>, vector<40x120xbf16>, vector<8x120xf32> -> vector<8x120xf32>
    %90 = vector.extract_strided_slice %87 {offsets = [0, 0], sizes = [8, 40], strides = [1, 1]} : vector<8x120xf32> to vector<8x40xf32>
    %91 = vector.extract_strided_slice %89 {offsets = [0, 0], sizes = [8, 40], strides = [1, 1]} : vector<8x120xf32> to vector<8x40xf32>
    %92 = arith.addf %90, %91 : vector<8x40xf32>
    %93 = arith.negf %92 : vector<8x40xf32>
    %94 = math.exp %93 : vector<8x40xf32>
    %cst_31 = arith.constant 1.000000e+00 : f32
    %95 = vector.broadcast %cst_31 : f32 to vector<8x40xf32>
    %96 = arith.addf %95, %94 : vector<8x40xf32>
    %97 = arith.divf %95, %96 : vector<8x40xf32>
    %98 = vector.extract_strided_slice %87 {offsets = [0, 40], sizes = [8, 40], strides = [1, 1]} : vector<8x120xf32> to vector<8x40xf32>
    %99 = vector.extract_strided_slice %89 {offsets = [0, 40], sizes = [8, 40], strides = [1, 1]} : vector<8x120xf32> to vector<8x40xf32>
    %100 = arith.addf %98, %99 : vector<8x40xf32>
    %101 = arith.negf %100 : vector<8x40xf32>
    %102 = math.exp %101 : vector<8x40xf32>
    %cst_32 = arith.constant 1.000000e+00 : f32
    %103 = vector.broadcast %cst_32 : f32 to vector<8x40xf32>
    %104 = arith.addf %103, %102 : vector<8x40xf32>
    %105 = arith.divf %103, %104 : vector<8x40xf32>
    %106 = vector.extract_strided_slice %87 {offsets = [0, 80], sizes = [8, 40], strides = [1, 1]} : vector<8x120xf32> to vector<8x40xf32>
    %107 = vector.extract_strided_slice %89 {offsets = [0, 80], sizes = [8, 40], strides = [1, 1]} : vector<8x120xf32> to vector<8x40xf32>
    %108 = arith.mulf %97, %107 : vector<8x40xf32>
    %109 = arith.addf %106, %108 : vector<8x40xf32>
    %110 = math.tanh %109 : vector<8x40xf32>
    %cst_33 = arith.constant 1.000000e+00 : f32
    %111 = vector.broadcast %cst_33 : f32 to vector<8x40xf32>
    %112 = arith.subf %111, %105 : vector<8x40xf32>
    %113 = arith.mulf %112, %110 : vector<8x40xf32>
    %114 = arith.mulf %105, %42 : vector<8x40xf32>
    %115 = arith.addf %113, %114 : vector<8x40xf32>
    %116 = arith.index_cast %85 : i32 to index
    %c0_34 = arith.constant 0 : index
    %117 = vector.load %arg5[%116, %c0_34] : memref<64x128xf32, #tpu.memory_space<vmem>>, vector<8x40xf32>
    tpu.vector_store %arg5[%116, %c0_34], %115 {strides = array<i32>} : memref<64x128xf32, #tpu.memory_space<vmem>>, vector<8x40xf32>,
    %118 = arith.truncf %115 : vector<8x40xf32> to vector<8x40xbf16>
    %cst_35 = arith.constant dense<0.000000e+00> : vector<8x48xf32>
    %119 = tpu.matmul %118, %7, %cst_35 {dimension_numbers = #tpu.dot_dimension_numbers<[1], [0], [0], [1], [0, 0, 1, 1], [], []>} : vector<8x40xbf16>, vector<40x48xbf16>, vector<8x48xf32> -> vector<8x48xf32>
    %120 = arith.truncf %74 : vector<8x16xf32> to vector<8x16xbf16>
    %cst_36 = arith.constant dense<0.000000e+00> : vector<8x48xf32>
    %121 = tpu.matmul %120, %8, %cst_36 {dimension_numbers = #tpu.dot_dimension_numbers<[1], [0], [0], [1], [0, 0, 1, 1], [], []>} : vector<8x16xbf16>, vector<16x48xbf16>, vector<8x48xf32> -> vector<8x48xf32>
    %122 = vector.extract_strided_slice %119 {offsets = [0, 0], sizes = [8, 16], strides = [1, 1]} : vector<8x48xf32> to vector<8x16xf32>
    %123 = vector.extract_strided_slice %121 {offsets = [0, 0], sizes = [8, 16], strides = [1, 1]} : vector<8x48xf32> to vector<8x16xf32>
    %124 = arith.addf %122, %123 : vector<8x16xf32>
    %125 = arith.negf %124 : vector<8x16xf32>
    %126 = math.exp %125 : vector<8x16xf32>
    %cst_37 = arith.constant 1.000000e+00 : f32
    %127 = vector.broadcast %cst_37 : f32 to vector<8x16xf32>
    %128 = arith.addf %127, %126 : vector<8x16xf32>
    %129 = arith.divf %127, %128 : vector<8x16xf32>
    %130 = vector.extract_strided_slice %119 {offsets = [0, 16], sizes = [8, 16], strides = [1, 1]} : vector<8x48xf32> to vector<8x16xf32>
    %131 = vector.extract_strided_slice %121 {offsets = [0, 16], sizes = [8, 16], strides = [1, 1]} : vector<8x48xf32> to vector<8x16xf32>
    %132 = arith.addf %130, %131 : vector<8x16xf32>
    %133 = arith.negf %132 : vector<8x16xf32>
    %134 = math.exp %133 : vector<8x16xf32>
    %cst_38 = arith.constant 1.000000e+00 : f32
    %135 = vector.broadcast %cst_38 : f32 to vector<8x16xf32>
    %136 = arith.addf %135, %134 : vector<8x16xf32>
    %137 = arith.divf %135, %136 : vector<8x16xf32>
    %138 = vector.extract_strided_slice %119 {offsets = [0, 32], sizes = [8, 16], strides = [1, 1]} : vector<8x48xf32> to vector<8x16xf32>
    %139 = vector.extract_strided_slice %121 {offsets = [0, 32], sizes = [8, 16], strides = [1, 1]} : vector<8x48xf32> to vector<8x16xf32>
    %140 = arith.mulf %129, %139 : vector<8x16xf32>
    %141 = arith.addf %138, %140 : vector<8x16xf32>
    %142 = math.tanh %141 : vector<8x16xf32>
    %cst_39 = arith.constant 1.000000e+00 : f32
    %143 = vector.broadcast %cst_39 : f32 to vector<8x16xf32>
    %144 = arith.subf %143, %137 : vector<8x16xf32>
    %145 = arith.mulf %144, %142 : vector<8x16xf32>
    %146 = arith.mulf %137, %74 : vector<8x16xf32>
    %147 = arith.addf %145, %146 : vector<8x16xf32>
    %148 = arith.index_cast %85 : i32 to index
    %c40_40 = arith.constant 40 : index
    %149 = vector.load %arg5[%148, %c40_40] : memref<64x128xf32, #tpu.memory_space<vmem>>, vector<8x16xf32>
    tpu.vector_store %arg5[%148, %c40_40], %147 {strides = array<i32>} : memref<64x128xf32, #tpu.memory_space<vmem>>, vector<8x16xf32>,
    %150 = arith.negf %147 : vector<8x16xf32>
    %151 = math.exp %150 : vector<8x16xf32>
    %cst_41 = arith.constant 1.000000e+00 : f32
    %152 = vector.broadcast %cst_41 : f32 to vector<8x16xf32>
    %153 = arith.addf %152, %151 : vector<8x16xf32>
    %154 = arith.divf %152, %153 : vector<8x16xf32>
    %155 = arith.index_cast %85 : i32 to index
    %c56_42 = arith.constant 56 : index
    %156 = vector.load %arg5[%155, %c56_42] : memref<64x128xf32, #tpu.memory_space<vmem>>, vector<8x16xf32>
    tpu.vector_store %arg5[%155, %c56_42], %154 {strides = array<i32>} : memref<64x128xf32, #tpu.memory_space<vmem>>, vector<8x16xf32>,
    %c2_i32 = arith.constant 2 : i32
    %c8_i32_43 = arith.constant 8 : i32
    %157 = arith.muli %c2_i32, %c8_i32_43 : i32
    %158 = tpu.assume_multiple %157, 8 : i32
    %159 = arith.index_cast %158 : i32 to index
    %c0_44 = arith.constant 0 : index
    %160 = vector.load %arg6[%159, %c0_44] : memref<64x120xf32, #tpu.memory_space<vmem>>, vector<8x120xf32>
    %161 = arith.truncf %115 : vector<8x40xf32> to vector<8x40xbf16>
    %cst_45 = arith.constant dense<0.000000e+00> : vector<8x120xf32>
    %162 = tpu.matmul %161, %6, %cst_45 {dimension_numbers = #tpu.dot_dimension_numbers<[1], [0], [0], [1], [0, 0, 1, 1], [], []>} : vector<8x40xbf16>, vector<40x120xbf16>, vector<8x120xf32> -> vector<8x120xf32>
    %163 = vector.extract_strided_slice %160 {offsets = [0, 0], sizes = [8, 40], strides = [1, 1]} : vector<8x120xf32> to vector<8x40xf32>
    %164 = vector.extract_strided_slice %162 {offsets = [0, 0], sizes = [8, 40], strides = [1, 1]} : vector<8x120xf32> to vector<8x40xf32>
    %165 = arith.addf %163, %164 : vector<8x40xf32>
    %166 = arith.negf %165 : vector<8x40xf32>
    %167 = math.exp %166 : vector<8x40xf32>
    %cst_46 = arith.constant 1.000000e+00 : f32
    %168 = vector.broadcast %cst_46 : f32 to vector<8x40xf32>
    %169 = arith.addf %168, %167 : vector<8x40xf32>
    %170 = arith.divf %168, %169 : vector<8x40xf32>
    %171 = vector.extract_strided_slice %160 {offsets = [0, 40], sizes = [8, 40], strides = [1, 1]} : vector<8x120xf32> to vector<8x40xf32>
    %172 = vector.extract_strided_slice %162 {offsets = [0, 40], sizes = [8, 40], strides = [1, 1]} : vector<8x120xf32> to vector<8x40xf32>
    %173 = arith.addf %171, %172 : vector<8x40xf32>
    %174 = arith.negf %173 : vector<8x40xf32>
    %175 = math.exp %174 : vector<8x40xf32>
    %cst_47 = arith.constant 1.000000e+00 : f32
    %176 = vector.broadcast %cst_47 : f32 to vector<8x40xf32>
    %177 = arith.addf %176, %175 : vector<8x40xf32>
    %178 = arith.divf %176, %177 : vector<8x40xf32>
    %179 = vector.extract_strided_slice %160 {offsets = [0, 80], sizes = [8, 40], strides = [1, 1]} : vector<8x120xf32> to vector<8x40xf32>
    %180 = vector.extract_strided_slice %162 {offsets = [0, 80], sizes = [8, 40], strides = [1, 1]} : vector<8x120xf32> to vector<8x40xf32>
    %181 = arith.mulf %170, %180 : vector<8x40xf32>
    %182 = arith.addf %179, %181 : vector<8x40xf32>
    %183 = math.tanh %182 : vector<8x40xf32>
    %cst_48 = arith.constant 1.000000e+00 : f32
    %184 = vector.broadcast %cst_48 : f32 to vector<8x40xf32>
    %185 = arith.subf %184, %178 : vector<8x40xf32>
    %186 = arith.mulf %185, %183 : vector<8x40xf32>
    %187 = arith.mulf %178, %115 : vector<8x40xf32>
    %188 = arith.addf %186, %187 : vector<8x40xf32>
    %189 = arith.index_cast %158 : i32 to index
    %c0_49 = arith.constant 0 : index
    %190 = vector.load %arg5[%189, %c0_49] : memref<64x128xf32, #tpu.memory_space<vmem>>, vector<8x40xf32>
    tpu.vector_store %arg5[%189, %c0_49], %188 {strides = array<i32>} : memref<64x128xf32, #tpu.memory_space<vmem>>, vector<8x40xf32>,
    %191 = arith.truncf %188 : vector<8x40xf32> to vector<8x40xbf16>
    %cst_50 = arith.constant dense<0.000000e+00> : vector<8x48xf32>
    %192 = tpu.matmul %191, %7, %cst_50 {dimension_numbers = #tpu.dot_dimension_numbers<[1], [0], [0], [1], [0, 0, 1, 1], [], []>} : vector<8x40xbf16>, vector<40x48xbf16>, vector<8x48xf32> -> vector<8x48xf32>
    %193 = arith.truncf %147 : vector<8x16xf32> to vector<8x16xbf16>
    %cst_51 = arith.constant dense<0.000000e+00> : vector<8x48xf32>
    %194 = tpu.matmul %193, %8, %cst_51 {dimension_numbers = #tpu.dot_dimension_numbers<[1], [0], [0], [1], [0, 0, 1, 1], [], []>} : vector<8x16xbf16>, vector<16x48xbf16>, vector<8x48xf32> -> vector<8x48xf32>
    %195 = vector.extract_strided_slice %192 {offsets = [0, 0], sizes = [8, 16], strides = [1, 1]} : vector<8x48xf32> to vector<8x16xf32>
    %196 = vector.extract_strided_slice %194 {offsets = [0, 0], sizes = [8, 16], strides = [1, 1]} : vector<8x48xf32> to vector<8x16xf32>
    %197 = arith.addf %195, %196 : vector<8x16xf32>
    %198 = arith.negf %197 : vector<8x16xf32>
    %199 = math.exp %198 : vector<8x16xf32>
    %cst_52 = arith.constant 1.000000e+00 : f32
    %200 = vector.broadcast %cst_52 : f32 to vector<8x16xf32>
    %201 = arith.addf %200, %199 : vector<8x16xf32>
    %202 = arith.divf %200, %201 : vector<8x16xf32>
    %203 = vector.extract_strided_slice %192 {offsets = [0, 16], sizes = [8, 16], strides = [1, 1]} : vector<8x48xf32> to vector<8x16xf32>
    %204 = vector.extract_strided_slice %194 {offsets = [0, 16], sizes = [8, 16], strides = [1, 1]} : vector<8x48xf32> to vector<8x16xf32>
    %205 = arith.addf %203, %204 : vector<8x16xf32>
    %206 = arith.negf %205 : vector<8x16xf32>
    %207 = math.exp %206 : vector<8x16xf32>
    %cst_53 = arith.constant 1.000000e+00 : f32
    %208 = vector.broadcast %cst_53 : f32 to vector<8x16xf32>
    %209 = arith.addf %208, %207 : vector<8x16xf32>
    %210 = arith.divf %208, %209 : vector<8x16xf32>
    %211 = vector.extract_strided_slice %192 {offsets = [0, 32], sizes = [8, 16], strides = [1, 1]} : vector<8x48xf32> to vector<8x16xf32>
    %212 = vector.extract_strided_slice %194 {offsets = [0, 32], sizes = [8, 16], strides = [1, 1]} : vector<8x48xf32> to vector<8x16xf32>
    %213 = arith.mulf %202, %212 : vector<8x16xf32>
    %214 = arith.addf %211, %213 : vector<8x16xf32>
    %215 = math.tanh %214 : vector<8x16xf32>
    %cst_54 = arith.constant 1.000000e+00 : f32
    %216 = vector.broadcast %cst_54 : f32 to vector<8x16xf32>
    %217 = arith.subf %216, %210 : vector<8x16xf32>
    %218 = arith.mulf %217, %215 : vector<8x16xf32>
    %219 = arith.mulf %210, %147 : vector<8x16xf32>
    %220 = arith.addf %218, %219 : vector<8x16xf32>
    %221 = arith.index_cast %158 : i32 to index
    %c40_55 = arith.constant 40 : index
    %222 = vector.load %arg5[%221, %c40_55] : memref<64x128xf32, #tpu.memory_space<vmem>>, vector<8x16xf32>
    tpu.vector_store %arg5[%221, %c40_55], %220 {strides = array<i32>} : memref<64x128xf32, #tpu.memory_space<vmem>>, vector<8x16xf32>,
    %223 = arith.negf %220 : vector<8x16xf32>
    %224 = math.exp %223 : vector<8x16xf32>
    %cst_56 = arith.constant 1.000000e+00 : f32
    %225 = vector.broadcast %cst_56 : f32 to vector<8x16xf32>
    %226 = arith.addf %225, %224 : vector<8x16xf32>
    %227 = arith.divf %225, %226 : vector<8x16xf32>
    %228 = arith.index_cast %158 : i32 to index
    %c56_57 = arith.constant 56 : index
    %229 = vector.load %arg5[%228, %c56_57] : memref<64x128xf32, #tpu.memory_space<vmem>>, vector<8x16xf32>
    tpu.vector_store %arg5[%228, %c56_57], %227 {strides = array<i32>} : memref<64x128xf32, #tpu.memory_space<vmem>>, vector<8x16xf32>,
    %c3_i32 = arith.constant 3 : i32
    %c8_i32_58 = arith.constant 8 : i32
    %230 = arith.muli %c3_i32, %c8_i32_58 : i32
    %231 = tpu.assume_multiple %230, 8 : i32
    %232 = arith.index_cast %231 : i32 to index
    %c0_59 = arith.constant 0 : index
    %233 = vector.load %arg6[%232, %c0_59] : memref<64x120xf32, #tpu.memory_space<vmem>>, vector<8x120xf32>
    %234 = arith.truncf %188 : vector<8x40xf32> to vector<8x40xbf16>
    %cst_60 = arith.constant dense<0.000000e+00> : vector<8x120xf32>
    %235 = tpu.matmul %234, %6, %cst_60 {dimension_numbers = #tpu.dot_dimension_numbers<[1], [0], [0], [1], [0, 0, 1, 1], [], []>} : vector<8x40xbf16>, vector<40x120xbf16>, vector<8x120xf32> -> vector<8x120xf32>
    %236 = vector.extract_strided_slice %233 {offsets = [0, 0], sizes = [8, 40], strides = [1, 1]} : vector<8x120xf32> to vector<8x40xf32>
    %237 = vector.extract_strided_slice %235 {offsets = [0, 0], sizes = [8, 40], strides = [1, 1]} : vector<8x120xf32> to vector<8x40xf32>
    %238 = arith.addf %236, %237 : vector<8x40xf32>
    %239 = arith.negf %238 : vector<8x40xf32>
    %240 = math.exp %239 : vector<8x40xf32>
    %cst_61 = arith.constant 1.000000e+00 : f32
    %241 = vector.broadcast %cst_61 : f32 to vector<8x40xf32>
    %242 = arith.addf %241, %240 : vector<8x40xf32>
    %243 = arith.divf %241, %242 : vector<8x40xf32>
    %244 = vector.extract_strided_slice %233 {offsets = [0, 40], sizes = [8, 40], strides = [1, 1]} : vector<8x120xf32> to vector<8x40xf32>
    %245 = vector.extract_strided_slice %235 {offsets = [0, 40], sizes = [8, 40], strides = [1, 1]} : vector<8x120xf32> to vector<8x40xf32>
    %246 = arith.addf %244, %245 : vector<8x40xf32>
    %247 = arith.negf %246 : vector<8x40xf32>
    %248 = math.exp %247 : vector<8x40xf32>
    %cst_62 = arith.constant 1.000000e+00 : f32
    %249 = vector.broadcast %cst_62 : f32 to vector<8x40xf32>
    %250 = arith.addf %249, %248 : vector<8x40xf32>
    %251 = arith.divf %249, %250 : vector<8x40xf32>
    %252 = vector.extract_strided_slice %233 {offsets = [0, 80], sizes = [8, 40], strides = [1, 1]} : vector<8x120xf32> to vector<8x40xf32>
    %253 = vector.extract_strided_slice %235 {offsets = [0, 80], sizes = [8, 40], strides = [1, 1]} : vector<8x120xf32> to vector<8x40xf32>
    %254 = arith.mulf %243, %253 : vector<8x40xf32>
    %255 = arith.addf %252, %254 : vector<8x40xf32>
    %256 = math.tanh %255 : vector<8x40xf32>
    %cst_63 = arith.constant 1.000000e+00 : f32
    %257 = vector.broadcast %cst_63 : f32 to vector<8x40xf32>
    %258 = arith.subf %257, %251 : vector<8x40xf32>
    %259 = arith.mulf %258, %256 : vector<8x40xf32>
    %260 = arith.mulf %251, %188 : vector<8x40xf32>
    %261 = arith.addf %259, %260 : vector<8x40xf32>
    %262 = arith.index_cast %231 : i32 to index
    %c0_64 = arith.constant 0 : index
    %263 = vector.load %arg5[%262, %c0_64] : memref<64x128xf32, #tpu.memory_space<vmem>>, vector<8x40xf32>
    tpu.vector_store %arg5[%262, %c0_64], %261 {strides = array<i32>} : memref<64x128xf32, #tpu.memory_space<vmem>>, vector<8x40xf32>,
    %264 = arith.truncf %261 : vector<8x40xf32> to vector<8x40xbf16>
    %cst_65 = arith.constant dense<0.000000e+00> : vector<8x48xf32>
    %265 = tpu.matmul %264, %7, %cst_65 {dimension_numbers = #tpu.dot_dimension_numbers<[1], [0], [0], [1], [0, 0, 1, 1], [], []>} : vector<8x40xbf16>, vector<40x48xbf16>, vector<8x48xf32> -> vector<8x48xf32>
    %266 = arith.truncf %220 : vector<8x16xf32> to vector<8x16xbf16>
    %cst_66 = arith.constant dense<0.000000e+00> : vector<8x48xf32>
    %267 = tpu.matmul %266, %8, %cst_66 {dimension_numbers = #tpu.dot_dimension_numbers<[1], [0], [0], [1], [0, 0, 1, 1], [], []>} : vector<8x16xbf16>, vector<16x48xbf16>, vector<8x48xf32> -> vector<8x48xf32>
    %268 = vector.extract_strided_slice %265 {offsets = [0, 0], sizes = [8, 16], strides = [1, 1]} : vector<8x48xf32> to vector<8x16xf32>
    %269 = vector.extract_strided_slice %267 {offsets = [0, 0], sizes = [8, 16], strides = [1, 1]} : vector<8x48xf32> to vector<8x16xf32>
    %270 = arith.addf %268, %269 : vector<8x16xf32>
    %271 = arith.negf %270 : vector<8x16xf32>
    %272 = math.exp %271 : vector<8x16xf32>
    %cst_67 = arith.constant 1.000000e+00 : f32
    %273 = vector.broadcast %cst_67 : f32 to vector<8x16xf32>
    %274 = arith.addf %273, %272 : vector<8x16xf32>
    %275 = arith.divf %273, %274 : vector<8x16xf32>
    %276 = vector.extract_strided_slice %265 {offsets = [0, 16], sizes = [8, 16], strides = [1, 1]} : vector<8x48xf32> to vector<8x16xf32>
    %277 = vector.extract_strided_slice %267 {offsets = [0, 16], sizes = [8, 16], strides = [1, 1]} : vector<8x48xf32> to vector<8x16xf32>
    %278 = arith.addf %276, %277 : vector<8x16xf32>
    %279 = arith.negf %278 : vector<8x16xf32>
    %280 = math.exp %279 : vector<8x16xf32>
    %cst_68 = arith.constant 1.000000e+00 : f32
    %281 = vector.broadcast %cst_68 : f32 to vector<8x16xf32>
    %282 = arith.addf %281, %280 : vector<8x16xf32>
    %283 = arith.divf %281, %282 : vector<8x16xf32>
    %284 = vector.extract_strided_slice %265 {offsets = [0, 32], sizes = [8, 16], strides = [1, 1]} : vector<8x48xf32> to vector<8x16xf32>
    %285 = vector.extract_strided_slice %267 {offsets = [0, 32], sizes = [8, 16], strides = [1, 1]} : vector<8x48xf32> to vector<8x16xf32>
    %286 = arith.mulf %275, %285 : vector<8x16xf32>
    %287 = arith.addf %284, %286 : vector<8x16xf32>
    %288 = math.tanh %287 : vector<8x16xf32>
    %cst_69 = arith.constant 1.000000e+00 : f32
    %289 = vector.broadcast %cst_69 : f32 to vector<8x16xf32>
    %290 = arith.subf %289, %283 : vector<8x16xf32>
    %291 = arith.mulf %290, %288 : vector<8x16xf32>
    %292 = arith.mulf %283, %220 : vector<8x16xf32>
    %293 = arith.addf %291, %292 : vector<8x16xf32>
    %294 = arith.index_cast %231 : i32 to index
    %c40_70 = arith.constant 40 : index
    %295 = vector.load %arg5[%294, %c40_70] : memref<64x128xf32, #tpu.memory_space<vmem>>, vector<8x16xf32>
    tpu.vector_store %arg5[%294, %c40_70], %293 {strides = array<i32>} : memref<64x128xf32, #tpu.memory_space<vmem>>, vector<8x16xf32>,
    %296 = arith.negf %293 : vector<8x16xf32>
    %297 = math.exp %296 : vector<8x16xf32>
    %cst_71 = arith.constant 1.000000e+00 : f32
    %298 = vector.broadcast %cst_71 : f32 to vector<8x16xf32>
    %299 = arith.addf %298, %297 : vector<8x16xf32>
    %300 = arith.divf %298, %299 : vector<8x16xf32>
    %301 = arith.index_cast %231 : i32 to index
    %c56_72 = arith.constant 56 : index
    %302 = vector.load %arg5[%301, %c56_72] : memref<64x128xf32, #tpu.memory_space<vmem>>, vector<8x16xf32>
    tpu.vector_store %arg5[%301, %c56_72], %300 {strides = array<i32>} : memref<64x128xf32, #tpu.memory_space<vmem>>, vector<8x16xf32>,
    %c4_i32 = arith.constant 4 : i32
    %c8_i32_73 = arith.constant 8 : i32
    %303 = arith.muli %c4_i32, %c8_i32_73 : i32
    %304 = tpu.assume_multiple %303, 8 : i32
    %305 = arith.index_cast %304 : i32 to index
    %c0_74 = arith.constant 0 : index
    %306 = vector.load %arg6[%305, %c0_74] : memref<64x120xf32, #tpu.memory_space<vmem>>, vector<8x120xf32>
    %307 = arith.truncf %261 : vector<8x40xf32> to vector<8x40xbf16>
    %cst_75 = arith.constant dense<0.000000e+00> : vector<8x120xf32>
    %308 = tpu.matmul %307, %6, %cst_75 {dimension_numbers = #tpu.dot_dimension_numbers<[1], [0], [0], [1], [0, 0, 1, 1], [], []>} : vector<8x40xbf16>, vector<40x120xbf16>, vector<8x120xf32> -> vector<8x120xf32>
    %309 = vector.extract_strided_slice %306 {offsets = [0, 0], sizes = [8, 40], strides = [1, 1]} : vector<8x120xf32> to vector<8x40xf32>
    %310 = vector.extract_strided_slice %308 {offsets = [0, 0], sizes = [8, 40], strides = [1, 1]} : vector<8x120xf32> to vector<8x40xf32>
    %311 = arith.addf %309, %310 : vector<8x40xf32>
    %312 = arith.negf %311 : vector<8x40xf32>
    %313 = math.exp %312 : vector<8x40xf32>
    %cst_76 = arith.constant 1.000000e+00 : f32
    %314 = vector.broadcast %cst_76 : f32 to vector<8x40xf32>
    %315 = arith.addf %314, %313 : vector<8x40xf32>
    %316 = arith.divf %314, %315 : vector<8x40xf32>
    %317 = vector.extract_strided_slice %306 {offsets = [0, 40], sizes = [8, 40], strides = [1, 1]} : vector<8x120xf32> to vector<8x40xf32>
    %318 = vector.extract_strided_slice %308 {offsets = [0, 40], sizes = [8, 40], strides = [1, 1]} : vector<8x120xf32> to vector<8x40xf32>
    %319 = arith.addf %317, %318 : vector<8x40xf32>
    %320 = arith.negf %319 : vector<8x40xf32>
    %321 = math.exp %320 : vector<8x40xf32>
    %cst_77 = arith.constant 1.000000e+00 : f32
    %322 = vector.broadcast %cst_77 : f32 to vector<8x40xf32>
    %323 = arith.addf %322, %321 : vector<8x40xf32>
    %324 = arith.divf %322, %323 : vector<8x40xf32>
    %325 = vector.extract_strided_slice %306 {offsets = [0, 80], sizes = [8, 40], strides = [1, 1]} : vector<8x120xf32> to vector<8x40xf32>
    %326 = vector.extract_strided_slice %308 {offsets = [0, 80], sizes = [8, 40], strides = [1, 1]} : vector<8x120xf32> to vector<8x40xf32>
    %327 = arith.mulf %316, %326 : vector<8x40xf32>
    %328 = arith.addf %325, %327 : vector<8x40xf32>
    %329 = math.tanh %328 : vector<8x40xf32>
    %cst_78 = arith.constant 1.000000e+00 : f32
    %330 = vector.broadcast %cst_78 : f32 to vector<8x40xf32>
    %331 = arith.subf %330, %324 : vector<8x40xf32>
    %332 = arith.mulf %331, %329 : vector<8x40xf32>
    %333 = arith.mulf %324, %261 : vector<8x40xf32>
    %334 = arith.addf %332, %333 : vector<8x40xf32>
    %335 = arith.index_cast %304 : i32 to index
    %c0_79 = arith.constant 0 : index
    %336 = vector.load %arg5[%335, %c0_79] : memref<64x128xf32, #tpu.memory_space<vmem>>, vector<8x40xf32>
    tpu.vector_store %arg5[%335, %c0_79], %334 {strides = array<i32>} : memref<64x128xf32, #tpu.memory_space<vmem>>, vector<8x40xf32>,
    %337 = arith.truncf %334 : vector<8x40xf32> to vector<8x40xbf16>
    %cst_80 = arith.constant dense<0.000000e+00> : vector<8x48xf32>
    %338 = tpu.matmul %337, %7, %cst_80 {dimension_numbers = #tpu.dot_dimension_numbers<[1], [0], [0], [1], [0, 0, 1, 1], [], []>} : vector<8x40xbf16>, vector<40x48xbf16>, vector<8x48xf32> -> vector<8x48xf32>
    %339 = arith.truncf %293 : vector<8x16xf32> to vector<8x16xbf16>
    %cst_81 = arith.constant dense<0.000000e+00> : vector<8x48xf32>
    %340 = tpu.matmul %339, %8, %cst_81 {dimension_numbers = #tpu.dot_dimension_numbers<[1], [0], [0], [1], [0, 0, 1, 1], [], []>} : vector<8x16xbf16>, vector<16x48xbf16>, vector<8x48xf32> -> vector<8x48xf32>
    %341 = vector.extract_strided_slice %338 {offsets = [0, 0], sizes = [8, 16], strides = [1, 1]} : vector<8x48xf32> to vector<8x16xf32>
    %342 = vector.extract_strided_slice %340 {offsets = [0, 0], sizes = [8, 16], strides = [1, 1]} : vector<8x48xf32> to vector<8x16xf32>
    %343 = arith.addf %341, %342 : vector<8x16xf32>
    %344 = arith.negf %343 : vector<8x16xf32>
    %345 = math.exp %344 : vector<8x16xf32>
    %cst_82 = arith.constant 1.000000e+00 : f32
    %346 = vector.broadcast %cst_82 : f32 to vector<8x16xf32>
    %347 = arith.addf %346, %345 : vector<8x16xf32>
    %348 = arith.divf %346, %347 : vector<8x16xf32>
    %349 = vector.extract_strided_slice %338 {offsets = [0, 16], sizes = [8, 16], strides = [1, 1]} : vector<8x48xf32> to vector<8x16xf32>
    %350 = vector.extract_strided_slice %340 {offsets = [0, 16], sizes = [8, 16], strides = [1, 1]} : vector<8x48xf32> to vector<8x16xf32>
    %351 = arith.addf %349, %350 : vector<8x16xf32>
    %352 = arith.negf %351 : vector<8x16xf32>
    %353 = math.exp %352 : vector<8x16xf32>
    %cst_83 = arith.constant 1.000000e+00 : f32
    %354 = vector.broadcast %cst_83 : f32 to vector<8x16xf32>
    %355 = arith.addf %354, %353 : vector<8x16xf32>
    %356 = arith.divf %354, %355 : vector<8x16xf32>
    %357 = vector.extract_strided_slice %338 {offsets = [0, 32], sizes = [8, 16], strides = [1, 1]} : vector<8x48xf32> to vector<8x16xf32>
    %358 = vector.extract_strided_slice %340 {offsets = [0, 32], sizes = [8, 16], strides = [1, 1]} : vector<8x48xf32> to vector<8x16xf32>
    %359 = arith.mulf %348, %358 : vector<8x16xf32>
    %360 = arith.addf %357, %359 : vector<8x16xf32>
    %361 = math.tanh %360 : vector<8x16xf32>
    %cst_84 = arith.constant 1.000000e+00 : f32
    %362 = vector.broadcast %cst_84 : f32 to vector<8x16xf32>
    %363 = arith.subf %362, %356 : vector<8x16xf32>
    %364 = arith.mulf %363, %361 : vector<8x16xf32>
    %365 = arith.mulf %356, %293 : vector<8x16xf32>
    %366 = arith.addf %364, %365 : vector<8x16xf32>
    %367 = arith.index_cast %304 : i32 to index
    %c40_85 = arith.constant 40 : index
    %368 = vector.load %arg5[%367, %c40_85] : memref<64x128xf32, #tpu.memory_space<vmem>>, vector<8x16xf32>
    tpu.vector_store %arg5[%367, %c40_85], %366 {strides = array<i32>} : memref<64x128xf32, #tpu.memory_space<vmem>>, vector<8x16xf32>,
    %369 = arith.negf %366 : vector<8x16xf32>
    %370 = math.exp %369 : vector<8x16xf32>
    %cst_86 = arith.constant 1.000000e+00 : f32
    %371 = vector.broadcast %cst_86 : f32 to vector<8x16xf32>
    %372 = arith.addf %371, %370 : vector<8x16xf32>
    %373 = arith.divf %371, %372 : vector<8x16xf32>
    %374 = arith.index_cast %304 : i32 to index
    %c56_87 = arith.constant 56 : index
    %375 = vector.load %arg5[%374, %c56_87] : memref<64x128xf32, #tpu.memory_space<vmem>>, vector<8x16xf32>
    tpu.vector_store %arg5[%374, %c56_87], %373 {strides = array<i32>} : memref<64x128xf32, #tpu.memory_space<vmem>>, vector<8x16xf32>,
    %c5_i32 = arith.constant 5 : i32
    %c8_i32_88 = arith.constant 8 : i32
    %376 = arith.muli %c5_i32, %c8_i32_88 : i32
    %377 = tpu.assume_multiple %376, 8 : i32
    %378 = arith.index_cast %377 : i32 to index
    %c0_89 = arith.constant 0 : index
    %379 = vector.load %arg6[%378, %c0_89] : memref<64x120xf32, #tpu.memory_space<vmem>>, vector<8x120xf32>
    %380 = arith.truncf %334 : vector<8x40xf32> to vector<8x40xbf16>
    %cst_90 = arith.constant dense<0.000000e+00> : vector<8x120xf32>
    %381 = tpu.matmul %380, %6, %cst_90 {dimension_numbers = #tpu.dot_dimension_numbers<[1], [0], [0], [1], [0, 0, 1, 1], [], []>} : vector<8x40xbf16>, vector<40x120xbf16>, vector<8x120xf32> -> vector<8x120xf32>
    %382 = vector.extract_strided_slice %379 {offsets = [0, 0], sizes = [8, 40], strides = [1, 1]} : vector<8x120xf32> to vector<8x40xf32>
    %383 = vector.extract_strided_slice %381 {offsets = [0, 0], sizes = [8, 40], strides = [1, 1]} : vector<8x120xf32> to vector<8x40xf32>
    %384 = arith.addf %382, %383 : vector<8x40xf32>
    %385 = arith.negf %384 : vector<8x40xf32>
    %386 = math.exp %385 : vector<8x40xf32>
    %cst_91 = arith.constant 1.000000e+00 : f32
    %387 = vector.broadcast %cst_91 : f32 to vector<8x40xf32>
    %388 = arith.addf %387, %386 : vector<8x40xf32>
    %389 = arith.divf %387, %388 : vector<8x40xf32>
    %390 = vector.extract_strided_slice %379 {offsets = [0, 40], sizes = [8, 40], strides = [1, 1]} : vector<8x120xf32> to vector<8x40xf32>
    %391 = vector.extract_strided_slice %381 {offsets = [0, 40], sizes = [8, 40], strides = [1, 1]} : vector<8x120xf32> to vector<8x40xf32>
    %392 = arith.addf %390, %391 : vector<8x40xf32>
    %393 = arith.negf %392 : vector<8x40xf32>
    %394 = math.exp %393 : vector<8x40xf32>
    %cst_92 = arith.constant 1.000000e+00 : f32
    %395 = vector.broadcast %cst_92 : f32 to vector<8x40xf32>
    %396 = arith.addf %395, %394 : vector<8x40xf32>
    %397 = arith.divf %395, %396 : vector<8x40xf32>
    %398 = vector.extract_strided_slice %379 {offsets = [0, 80], sizes = [8, 40], strides = [1, 1]} : vector<8x120xf32> to vector<8x40xf32>
    %399 = vector.extract_strided_slice %381 {offsets = [0, 80], sizes = [8, 40], strides = [1, 1]} : vector<8x120xf32> to vector<8x40xf32>
    %400 = arith.mulf %389, %399 : vector<8x40xf32>
    %401 = arith.addf %398, %400 : vector<8x40xf32>
    %402 = math.tanh %401 : vector<8x40xf32>
    %cst_93 = arith.constant 1.000000e+00 : f32
    %403 = vector.broadcast %cst_93 : f32 to vector<8x40xf32>
    %404 = arith.subf %403, %397 : vector<8x40xf32>
    %405 = arith.mulf %404, %402 : vector<8x40xf32>
    %406 = arith.mulf %397, %334 : vector<8x40xf32>
    %407 = arith.addf %405, %406 : vector<8x40xf32>
    %408 = arith.index_cast %377 : i32 to index
    %c0_94 = arith.constant 0 : index
    %409 = vector.load %arg5[%408, %c0_94] : memref<64x128xf32, #tpu.memory_space<vmem>>, vector<8x40xf32>
    tpu.vector_store %arg5[%408, %c0_94], %407 {strides = array<i32>} : memref<64x128xf32, #tpu.memory_space<vmem>>, vector<8x40xf32>,
    %410 = arith.truncf %407 : vector<8x40xf32> to vector<8x40xbf16>
    %cst_95 = arith.constant dense<0.000000e+00> : vector<8x48xf32>
    %411 = tpu.matmul %410, %7, %cst_95 {dimension_numbers = #tpu.dot_dimension_numbers<[1], [0], [0], [1], [0, 0, 1, 1], [], []>} : vector<8x40xbf16>, vector<40x48xbf16>, vector<8x48xf32> -> vector<8x48xf32>
    %412 = arith.truncf %366 : vector<8x16xf32> to vector<8x16xbf16>
    %cst_96 = arith.constant dense<0.000000e+00> : vector<8x48xf32>
    %413 = tpu.matmul %412, %8, %cst_96 {dimension_numbers = #tpu.dot_dimension_numbers<[1], [0], [0], [1], [0, 0, 1, 1], [], []>} : vector<8x16xbf16>, vector<16x48xbf16>, vector<8x48xf32> -> vector<8x48xf32>
    %414 = vector.extract_strided_slice %411 {offsets = [0, 0], sizes = [8, 16], strides = [1, 1]} : vector<8x48xf32> to vector<8x16xf32>
    %415 = vector.extract_strided_slice %413 {offsets = [0, 0], sizes = [8, 16], strides = [1, 1]} : vector<8x48xf32> to vector<8x16xf32>
    %416 = arith.addf %414, %415 : vector<8x16xf32>
    %417 = arith.negf %416 : vector<8x16xf32>
    %418 = math.exp %417 : vector<8x16xf32>
    %cst_97 = arith.constant 1.000000e+00 : f32
    %419 = vector.broadcast %cst_97 : f32 to vector<8x16xf32>
    %420 = arith.addf %419, %418 : vector<8x16xf32>
    %421 = arith.divf %419, %420 : vector<8x16xf32>
    %422 = vector.extract_strided_slice %411 {offsets = [0, 16], sizes = [8, 16], strides = [1, 1]} : vector<8x48xf32> to vector<8x16xf32>
    %423 = vector.extract_strided_slice %413 {offsets = [0, 16], sizes = [8, 16], strides = [1, 1]} : vector<8x48xf32> to vector<8x16xf32>
    %424 = arith.addf %422, %423 : vector<8x16xf32>
    %425 = arith.negf %424 : vector<8x16xf32>
    %426 = math.exp %425 : vector<8x16xf32>
    %cst_98 = arith.constant 1.000000e+00 : f32
    %427 = vector.broadcast %cst_98 : f32 to vector<8x16xf32>
    %428 = arith.addf %427, %426 : vector<8x16xf32>
    %429 = arith.divf %427, %428 : vector<8x16xf32>
    %430 = vector.extract_strided_slice %411 {offsets = [0, 32], sizes = [8, 16], strides = [1, 1]} : vector<8x48xf32> to vector<8x16xf32>
    %431 = vector.extract_strided_slice %413 {offsets = [0, 32], sizes = [8, 16], strides = [1, 1]} : vector<8x48xf32> to vector<8x16xf32>
    %432 = arith.mulf %421, %431 : vector<8x16xf32>
    %433 = arith.addf %430, %432 : vector<8x16xf32>
    %434 = math.tanh %433 : vector<8x16xf32>
    %cst_99 = arith.constant 1.000000e+00 : f32
    %435 = vector.broadcast %cst_99 : f32 to vector<8x16xf32>
    %436 = arith.subf %435, %429 : vector<8x16xf32>
    %437 = arith.mulf %436, %434 : vector<8x16xf32>
    %438 = arith.mulf %429, %366 : vector<8x16xf32>
    %439 = arith.addf %437, %438 : vector<8x16xf32>
    %440 = arith.index_cast %377 : i32 to index
    %c40_100 = arith.constant 40 : index
    %441 = vector.load %arg5[%440, %c40_100] : memref<64x128xf32, #tpu.memory_space<vmem>>, vector<8x16xf32>
    tpu.vector_store %arg5[%440, %c40_100], %439 {strides = array<i32>} : memref<64x128xf32, #tpu.memory_space<vmem>>, vector<8x16xf32>,
    %442 = arith.negf %439 : vector<8x16xf32>
    %443 = math.exp %442 : vector<8x16xf32>
    %cst_101 = arith.constant 1.000000e+00 : f32
    %444 = vector.broadcast %cst_101 : f32 to vector<8x16xf32>
    %445 = arith.addf %444, %443 : vector<8x16xf32>
    %446 = arith.divf %444, %445 : vector<8x16xf32>
    %447 = arith.index_cast %377 : i32 to index
    %c56_102 = arith.constant 56 : index
    %448 = vector.load %arg5[%447, %c56_102] : memref<64x128xf32, #tpu.memory_space<vmem>>, vector<8x16xf32>
    tpu.vector_store %arg5[%447, %c56_102], %446 {strides = array<i32>} : memref<64x128xf32, #tpu.memory_space<vmem>>, vector<8x16xf32>,
    %c6_i32 = arith.constant 6 : i32
    %c8_i32_103 = arith.constant 8 : i32
    %449 = arith.muli %c6_i32, %c8_i32_103 : i32
    %450 = tpu.assume_multiple %449, 8 : i32
    %451 = arith.index_cast %450 : i32 to index
    %c0_104 = arith.constant 0 : index
    %452 = vector.load %arg6[%451, %c0_104] : memref<64x120xf32, #tpu.memory_space<vmem>>, vector<8x120xf32>
    %453 = arith.truncf %407 : vector<8x40xf32> to vector<8x40xbf16>
    %cst_105 = arith.constant dense<0.000000e+00> : vector<8x120xf32>
    %454 = tpu.matmul %453, %6, %cst_105 {dimension_numbers = #tpu.dot_dimension_numbers<[1], [0], [0], [1], [0, 0, 1, 1], [], []>} : vector<8x40xbf16>, vector<40x120xbf16>, vector<8x120xf32> -> vector<8x120xf32>
    %455 = vector.extract_strided_slice %452 {offsets = [0, 0], sizes = [8, 40], strides = [1, 1]} : vector<8x120xf32> to vector<8x40xf32>
    %456 = vector.extract_strided_slice %454 {offsets = [0, 0], sizes = [8, 40], strides = [1, 1]} : vector<8x120xf32> to vector<8x40xf32>
    %457 = arith.addf %455, %456 : vector<8x40xf32>
    %458 = arith.negf %457 : vector<8x40xf32>
    %459 = math.exp %458 : vector<8x40xf32>
    %cst_106 = arith.constant 1.000000e+00 : f32
    %460 = vector.broadcast %cst_106 : f32 to vector<8x40xf32>
    %461 = arith.addf %460, %459 : vector<8x40xf32>
    %462 = arith.divf %460, %461 : vector<8x40xf32>
    %463 = vector.extract_strided_slice %452 {offsets = [0, 40], sizes = [8, 40], strides = [1, 1]} : vector<8x120xf32> to vector<8x40xf32>
    %464 = vector.extract_strided_slice %454 {offsets = [0, 40], sizes = [8, 40], strides = [1, 1]} : vector<8x120xf32> to vector<8x40xf32>
    %465 = arith.addf %463, %464 : vector<8x40xf32>
    %466 = arith.negf %465 : vector<8x40xf32>
    %467 = math.exp %466 : vector<8x40xf32>
    %cst_107 = arith.constant 1.000000e+00 : f32
    %468 = vector.broadcast %cst_107 : f32 to vector<8x40xf32>
    %469 = arith.addf %468, %467 : vector<8x40xf32>
    %470 = arith.divf %468, %469 : vector<8x40xf32>
    %471 = vector.extract_strided_slice %452 {offsets = [0, 80], sizes = [8, 40], strides = [1, 1]} : vector<8x120xf32> to vector<8x40xf32>
    %472 = vector.extract_strided_slice %454 {offsets = [0, 80], sizes = [8, 40], strides = [1, 1]} : vector<8x120xf32> to vector<8x40xf32>
    %473 = arith.mulf %462, %472 : vector<8x40xf32>
    %474 = arith.addf %471, %473 : vector<8x40xf32>
    %475 = math.tanh %474 : vector<8x40xf32>
    %cst_108 = arith.constant 1.000000e+00 : f32
    %476 = vector.broadcast %cst_108 : f32 to vector<8x40xf32>
    %477 = arith.subf %476, %470 : vector<8x40xf32>
    %478 = arith.mulf %477, %475 : vector<8x40xf32>
    %479 = arith.mulf %470, %407 : vector<8x40xf32>
    %480 = arith.addf %478, %479 : vector<8x40xf32>
    %481 = arith.index_cast %450 : i32 to index
    %c0_109 = arith.constant 0 : index
    %482 = vector.load %arg5[%481, %c0_109] : memref<64x128xf32, #tpu.memory_space<vmem>>, vector<8x40xf32>
    tpu.vector_store %arg5[%481, %c0_109], %480 {strides = array<i32>} : memref<64x128xf32, #tpu.memory_space<vmem>>, vector<8x40xf32>,
    %483 = arith.truncf %480 : vector<8x40xf32> to vector<8x40xbf16>
    %cst_110 = arith.constant dense<0.000000e+00> : vector<8x48xf32>
    %484 = tpu.matmul %483, %7, %cst_110 {dimension_numbers = #tpu.dot_dimension_numbers<[1], [0], [0], [1], [0, 0, 1, 1], [], []>} : vector<8x40xbf16>, vector<40x48xbf16>, vector<8x48xf32> -> vector<8x48xf32>
    %485 = arith.truncf %439 : vector<8x16xf32> to vector<8x16xbf16>
    %cst_111 = arith.constant dense<0.000000e+00> : vector<8x48xf32>
    %486 = tpu.matmul %485, %8, %cst_111 {dimension_numbers = #tpu.dot_dimension_numbers<[1], [0], [0], [1], [0, 0, 1, 1], [], []>} : vector<8x16xbf16>, vector<16x48xbf16>, vector<8x48xf32> -> vector<8x48xf32>
    %487 = vector.extract_strided_slice %484 {offsets = [0, 0], sizes = [8, 16], strides = [1, 1]} : vector<8x48xf32> to vector<8x16xf32>
    %488 = vector.extract_strided_slice %486 {offsets = [0, 0], sizes = [8, 16], strides = [1, 1]} : vector<8x48xf32> to vector<8x16xf32>
    %489 = arith.addf %487, %488 : vector<8x16xf32>
    %490 = arith.negf %489 : vector<8x16xf32>
    %491 = math.exp %490 : vector<8x16xf32>
    %cst_112 = arith.constant 1.000000e+00 : f32
    %492 = vector.broadcast %cst_112 : f32 to vector<8x16xf32>
    %493 = arith.addf %492, %491 : vector<8x16xf32>
    %494 = arith.divf %492, %493 : vector<8x16xf32>
    %495 = vector.extract_strided_slice %484 {offsets = [0, 16], sizes = [8, 16], strides = [1, 1]} : vector<8x48xf32> to vector<8x16xf32>
    %496 = vector.extract_strided_slice %486 {offsets = [0, 16], sizes = [8, 16], strides = [1, 1]} : vector<8x48xf32> to vector<8x16xf32>
    %497 = arith.addf %495, %496 : vector<8x16xf32>
    %498 = arith.negf %497 : vector<8x16xf32>
    %499 = math.exp %498 : vector<8x16xf32>
    %cst_113 = arith.constant 1.000000e+00 : f32
    %500 = vector.broadcast %cst_113 : f32 to vector<8x16xf32>
    %501 = arith.addf %500, %499 : vector<8x16xf32>
    %502 = arith.divf %500, %501 : vector<8x16xf32>
    %503 = vector.extract_strided_slice %484 {offsets = [0, 32], sizes = [8, 16], strides = [1, 1]} : vector<8x48xf32> to vector<8x16xf32>
    %504 = vector.extract_strided_slice %486 {offsets = [0, 32], sizes = [8, 16], strides = [1, 1]} : vector<8x48xf32> to vector<8x16xf32>
    %505 = arith.mulf %494, %504 : vector<8x16xf32>
    %506 = arith.addf %503, %505 : vector<8x16xf32>
    %507 = math.tanh %506 : vector<8x16xf32>
    %cst_114 = arith.constant 1.000000e+00 : f32
    %508 = vector.broadcast %cst_114 : f32 to vector<8x16xf32>
    %509 = arith.subf %508, %502 : vector<8x16xf32>
    %510 = arith.mulf %509, %507 : vector<8x16xf32>
    %511 = arith.mulf %502, %439 : vector<8x16xf32>
    %512 = arith.addf %510, %511 : vector<8x16xf32>
    %513 = arith.index_cast %450 : i32 to index
    %c40_115 = arith.constant 40 : index
    %514 = vector.load %arg5[%513, %c40_115] : memref<64x128xf32, #tpu.memory_space<vmem>>, vector<8x16xf32>
    tpu.vector_store %arg5[%513, %c40_115], %512 {strides = array<i32>} : memref<64x128xf32, #tpu.memory_space<vmem>>, vector<8x16xf32>,
    %515 = arith.negf %512 : vector<8x16xf32>
    %516 = math.exp %515 : vector<8x16xf32>
    %cst_116 = arith.constant 1.000000e+00 : f32
    %517 = vector.broadcast %cst_116 : f32 to vector<8x16xf32>
    %518 = arith.addf %517, %516 : vector<8x16xf32>
    %519 = arith.divf %517, %518 : vector<8x16xf32>
    %520 = arith.index_cast %450 : i32 to index
    %c56_117 = arith.constant 56 : index
    %521 = vector.load %arg5[%520, %c56_117] : memref<64x128xf32, #tpu.memory_space<vmem>>, vector<8x16xf32>
    tpu.vector_store %arg5[%520, %c56_117], %519 {strides = array<i32>} : memref<64x128xf32, #tpu.memory_space<vmem>>, vector<8x16xf32>,
    %c7_i32 = arith.constant 7 : i32
    %c8_i32_118 = arith.constant 8 : i32
    %522 = arith.muli %c7_i32, %c8_i32_118 : i32
    %523 = tpu.assume_multiple %522, 8 : i32
    %524 = arith.index_cast %523 : i32 to index
    %c0_119 = arith.constant 0 : index
    %525 = vector.load %arg6[%524, %c0_119] : memref<64x120xf32, #tpu.memory_space<vmem>>, vector<8x120xf32>
    %526 = arith.truncf %480 : vector<8x40xf32> to vector<8x40xbf16>
    %cst_120 = arith.constant dense<0.000000e+00> : vector<8x120xf32>
    %527 = tpu.matmul %526, %6, %cst_120 {dimension_numbers = #tpu.dot_dimension_numbers<[1], [0], [0], [1], [0, 0, 1, 1], [], []>} : vector<8x40xbf16>, vector<40x120xbf16>, vector<8x120xf32> -> vector<8x120xf32>
    %528 = vector.extract_strided_slice %525 {offsets = [0, 0], sizes = [8, 40], strides = [1, 1]} : vector<8x120xf32> to vector<8x40xf32>
    %529 = vector.extract_strided_slice %527 {offsets = [0, 0], sizes = [8, 40], strides = [1, 1]} : vector<8x120xf32> to vector<8x40xf32>
    %530 = arith.addf %528, %529 : vector<8x40xf32>
    %531 = arith.negf %530 : vector<8x40xf32>
    %532 = math.exp %531 : vector<8x40xf32>
    %cst_121 = arith.constant 1.000000e+00 : f32
    %533 = vector.broadcast %cst_121 : f32 to vector<8x40xf32>
    %534 = arith.addf %533, %532 : vector<8x40xf32>
    %535 = arith.divf %533, %534 : vector<8x40xf32>
    %536 = vector.extract_strided_slice %525 {offsets = [0, 40], sizes = [8, 40], strides = [1, 1]} : vector<8x120xf32> to vector<8x40xf32>
    %537 = vector.extract_strided_slice %527 {offsets = [0, 40], sizes = [8, 40], strides = [1, 1]} : vector<8x120xf32> to vector<8x40xf32>
    %538 = arith.addf %536, %537 : vector<8x40xf32>
    %539 = arith.negf %538 : vector<8x40xf32>
    %540 = math.exp %539 : vector<8x40xf32>
    %cst_122 = arith.constant 1.000000e+00 : f32
    %541 = vector.broadcast %cst_122 : f32 to vector<8x40xf32>
    %542 = arith.addf %541, %540 : vector<8x40xf32>
    %543 = arith.divf %541, %542 : vector<8x40xf32>
    %544 = vector.extract_strided_slice %525 {offsets = [0, 80], sizes = [8, 40], strides = [1, 1]} : vector<8x120xf32> to vector<8x40xf32>
    %545 = vector.extract_strided_slice %527 {offsets = [0, 80], sizes = [8, 40], strides = [1, 1]} : vector<8x120xf32> to vector<8x40xf32>
    %546 = arith.mulf %535, %545 : vector<8x40xf32>
    %547 = arith.addf %544, %546 : vector<8x40xf32>
    %548 = math.tanh %547 : vector<8x40xf32>
    %cst_123 = arith.constant 1.000000e+00 : f32
    %549 = vector.broadcast %cst_123 : f32 to vector<8x40xf32>
    %550 = arith.subf %549, %543 : vector<8x40xf32>
    %551 = arith.mulf %550, %548 : vector<8x40xf32>
    %552 = arith.mulf %543, %480 : vector<8x40xf32>
    %553 = arith.addf %551, %552 : vector<8x40xf32>
    %554 = arith.index_cast %523 : i32 to index
    %c0_124 = arith.constant 0 : index
    %555 = vector.load %arg5[%554, %c0_124] : memref<64x128xf32, #tpu.memory_space<vmem>>, vector<8x40xf32>
    tpu.vector_store %arg5[%554, %c0_124], %553 {strides = array<i32>} : memref<64x128xf32, #tpu.memory_space<vmem>>, vector<8x40xf32>,
    %556 = arith.truncf %553 : vector<8x40xf32> to vector<8x40xbf16>
    %cst_125 = arith.constant dense<0.000000e+00> : vector<8x48xf32>
    %557 = tpu.matmul %556, %7, %cst_125 {dimension_numbers = #tpu.dot_dimension_numbers<[1], [0], [0], [1], [0, 0, 1, 1], [], []>} : vector<8x40xbf16>, vector<40x48xbf16>, vector<8x48xf32> -> vector<8x48xf32>
    %558 = arith.truncf %512 : vector<8x16xf32> to vector<8x16xbf16>
    %cst_126 = arith.constant dense<0.000000e+00> : vector<8x48xf32>
    %559 = tpu.matmul %558, %8, %cst_126 {dimension_numbers = #tpu.dot_dimension_numbers<[1], [0], [0], [1], [0, 0, 1, 1], [], []>} : vector<8x16xbf16>, vector<16x48xbf16>, vector<8x48xf32> -> vector<8x48xf32>
    %560 = vector.extract_strided_slice %557 {offsets = [0, 0], sizes = [8, 16], strides = [1, 1]} : vector<8x48xf32> to vector<8x16xf32>
    %561 = vector.extract_strided_slice %559 {offsets = [0, 0], sizes = [8, 16], strides = [1, 1]} : vector<8x48xf32> to vector<8x16xf32>
    %562 = arith.addf %560, %561 : vector<8x16xf32>
    %563 = arith.negf %562 : vector<8x16xf32>
    %564 = math.exp %563 : vector<8x16xf32>
    %cst_127 = arith.constant 1.000000e+00 : f32
    %565 = vector.broadcast %cst_127 : f32 to vector<8x16xf32>
    %566 = arith.addf %565, %564 : vector<8x16xf32>
    %567 = arith.divf %565, %566 : vector<8x16xf32>
    %568 = vector.extract_strided_slice %557 {offsets = [0, 16], sizes = [8, 16], strides = [1, 1]} : vector<8x48xf32> to vector<8x16xf32>
    %569 = vector.extract_strided_slice %559 {offsets = [0, 16], sizes = [8, 16], strides = [1, 1]} : vector<8x48xf32> to vector<8x16xf32>
    %570 = arith.addf %568, %569 : vector<8x16xf32>
    %571 = arith.negf %570 : vector<8x16xf32>
    %572 = math.exp %571 : vector<8x16xf32>
    %cst_128 = arith.constant 1.000000e+00 : f32
    %573 = vector.broadcast %cst_128 : f32 to vector<8x16xf32>
    %574 = arith.addf %573, %572 : vector<8x16xf32>
    %575 = arith.divf %573, %574 : vector<8x16xf32>
    %576 = vector.extract_strided_slice %557 {offsets = [0, 32], sizes = [8, 16], strides = [1, 1]} : vector<8x48xf32> to vector<8x16xf32>
    %577 = vector.extract_strided_slice %559 {offsets = [0, 32], sizes = [8, 16], strides = [1, 1]} : vector<8x48xf32> to vector<8x16xf32>
    %578 = arith.mulf %567, %577 : vector<8x16xf32>
    %579 = arith.addf %576, %578 : vector<8x16xf32>
    %580 = math.tanh %579 : vector<8x16xf32>
    %cst_129 = arith.constant 1.000000e+00 : f32
    %581 = vector.broadcast %cst_129 : f32 to vector<8x16xf32>
    %582 = arith.subf %581, %575 : vector<8x16xf32>
    %583 = arith.mulf %582, %580 : vector<8x16xf32>
    %584 = arith.mulf %575, %512 : vector<8x16xf32>
    %585 = arith.addf %583, %584 : vector<8x16xf32>
    %586 = arith.index_cast %523 : i32 to index
    %c40_130 = arith.constant 40 : index
    %587 = vector.load %arg5[%586, %c40_130] : memref<64x128xf32, #tpu.memory_space<vmem>>, vector<8x16xf32>
    tpu.vector_store %arg5[%586, %c40_130], %585 {strides = array<i32>} : memref<64x128xf32, #tpu.memory_space<vmem>>, vector<8x16xf32>,
    %588 = arith.negf %585 : vector<8x16xf32>
    %589 = math.exp %588 : vector<8x16xf32>
    %cst_131 = arith.constant 1.000000e+00 : f32
    %590 = vector.broadcast %cst_131 : f32 to vector<8x16xf32>
    %591 = arith.addf %590, %589 : vector<8x16xf32>
    %592 = arith.divf %590, %591 : vector<8x16xf32>
    %593 = arith.index_cast %523 : i32 to index
    %c56_132 = arith.constant 56 : index
    %594 = vector.load %arg5[%593, %c56_132] : memref<64x128xf32, #tpu.memory_space<vmem>>, vector<8x16xf32>
    tpu.vector_store %arg5[%593, %c56_132], %592 {strides = array<i32>} : memref<64x128xf32, #tpu.memory_space<vmem>>, vector<8x16xf32>,
    %c8_i32_133 = arith.constant 8 : i32
    return
  }
}

</mosaic_0001>

<llo_original>
// kernel: tpu_custom_call.1
$region0: #{tpu_custom_call.1}
  #allocation0 [shape = 'u32[]', space=smem, size = 0x4, offset = 0x4, fixed_abs, tag = 'smem constant byte address 0x4 - core index']
  #allocation1 [shape = 'u32[144,128]{1,0:T(1,128)}', space=vmem, size = 0x12000, scoped, tag = 'internal scratch']
  #allocation2 [shape = 'f32[64,120]{1,0:T(8,128)}', space=vmem, size = 0x8000, scoped, tag = 'scratch operand']
  %s0 = inlined_call_operand.vmem [shape: bf16[64,32], index: 0, kind: input, shape index: {}]
  %s1 = inlined_call_operand.hbm [shape: bf16[32,120], index: 1, kind: input, shape index: {}]
  %s2 = inlined_call_operand.vmem [shape: bf16[40,120], index: 2, kind: input, shape index: {}]
  %s3 = inlined_call_operand.vmem [shape: bf16[40,48], index: 3, kind: input, shape index: {}]
  %s4 = inlined_call_operand.vmem [shape: bf16[16,48], index: 4, kind: input, shape index: {}]
  %s5 = inlined_call_operand.hbm [shape: f32[64,128], index: 5, kind: output, shape index: {}]
  %s6 = sld [smem:[#allocation0]]
  $region34: #{tpu_custom_call.1} parent=0
    _
  %s8 = ssub.s32 1, %s6
  %s9 = scalar_select 0, %s8, %s6
  $region1: #{tpu_custom_call.1} parent=0
    #allocation3 [shape = 'u8[8192]{0}', space=vmem, size = 0x2000, scoped, tag = 'input window, operand 1, single buffered']
    #allocation4 [shape = 's32[1]{0}', space=sflag, size = 0x4, scoped, tag = 'scoped memory for tpu_custom_call.1']
    #allocation5 [shape = 's32[1]{0}', space=sflag, size = 0x4, scoped, tag = 'scoped memory for tpu_custom_call.1']
    #allocation6 [shape = 'u8[32768]{0}', space=vmem, size = 0x8000, scoped, tag = 'output window, operand 0, single buffered']
    %10 = vsyncpa [#allocation4], 0
    %11 = vsyncpa [#allocation5], 0
    // Predicated region
    $region2: #{tpu_custom_call.1} parent=1 // pred_check
      _
    $region3: #{tpu_custom_call.1} parent=1 // pred_check_branch
      %13 = sbr.rel (0) target = $region5
    $region4: #{tpu_custom_call.1} parent=1 // pred_region
      _
    $region5: #{tpu_custom_call.1} parent=1 // pred_fallthru
      _
    // Predicated region
    $region6: #{tpu_custom_call.1} parent=1 // pred_check
      _
    $region7: #{tpu_custom_call.1} parent=1 // pred_check_branch
      %15 = sbr.rel (0) target = $region9
    $region8: #{tpu_custom_call.1} parent=1 // pred_region
      %s17 = ssub.s32 256, 256
      %18 = vsyncadd [#allocation4], %s17
      %s19 = sshll.u32 [#allocation3], 4
      %s20 = int_to_ptr.vmem [resolvable:$true] %s19
      %25 = dma.hbm_to_vmem [thread:$0]  %s1, 256, %s20, [#allocation4], 64, 64, 4
    $region9: #{tpu_custom_call.1} parent=1 // pred_fallthru
      _
    // Predicated region
    $region10: #{tpu_custom_call.1} parent=1 // pred_check
      _
    $region11: #{tpu_custom_call.1} parent=1 // pred_check_branch
      %27 = sbr.rel (0) target = $region13
    $region12: #{tpu_custom_call.1} parent=1 // pred_region
      _
    $region13: #{tpu_custom_call.1} parent=1 // pred_fallthru
      _
    // Predicated region
    $region14: #{tpu_custom_call.1} parent=1 // pred_check
      _
    $region15: #{tpu_custom_call.1} parent=1 // pred_check_branch
      %29 = sbr.rel (0) target = $region17
    $region16: #{tpu_custom_call.1} parent=1 // pred_region
      _
    $region17: #{tpu_custom_call.1} parent=1 // pred_fallthru
      _
    // Predicated region
    $region18: #{tpu_custom_call.1} parent=1 // pred_check
      _
    $region19: #{tpu_custom_call.1} parent=1 // pred_check_branch
      %31 = sbr.rel (0) target = $region21
    $region20: #{tpu_custom_call.1} parent=1 // pred_region
      _
    $region21: #{tpu_custom_call.1} parent=1 // pred_fallthru
      _
    // Predicated region
    $region22: #{tpu_custom_call.1} parent=1 // pred_check
      _
    $region23: #{tpu_custom_call.1} parent=1 // pred_check_branch
      %33 = sbr.rel (0) target = $region25
    $region24: #{tpu_custom_call.1} parent=1 // pred_region
      %34 = dma.done [#allocation4], 256
    $region25: #{tpu_custom_call.1} parent=1 // pred_fallthru
      _
    %36 = vst [vmem:[#allocation6] sm:$0xff] 0.0
    %37 = vst [vmem:[#allocation6 + $0x8] sm:$0xff] 0.0
    %38 = vst [vmem:[#allocation6 + $0x10] sm:$0xff] 0.0
    %39 = vst [vmem:[#allocation6 + $0x18] sm:$0xff] 0.0
    %40 = vst [vmem:[#allocation6 + $0x20] sm:$0xff] 0.0
    %41 = vst [vmem:[#allocation6 + $0x28] sm:$0xff] 0.0
    %42 = vst [vmem:[#allocation6 + $0x30] sm:$0xff] 0.0
    %43 = vst [vmem:[#allocation6 + $0x38] sm:$0xff] 0.0
    %v44 = vld [vmem:[%s0] sm:$0xf]
    %v45 = vld [vmem:[%s0 + $0x4] sm:$0xf]
    %v46 = vld [vmem:[%s0 + $0x8] sm:$0xf]
    %v47 = vld [vmem:[%s0 + $0xc] sm:$0xf]
    %v48 = vld [vmem:[%s0 + $0x10] sm:$0xf]
    %v49 = vld [vmem:[%s0 + $0x14] sm:$0xf]
    %v50 = vld [vmem:[%s0 + $0x18] sm:$0xf]
    %v51 = vld [vmem:[%s0 + $0x1c] sm:$0xf]
    %v52 = vld [vmem:[#allocation3] sm:$0xf]
    %v53 = vld [vmem:[#allocation3 + $0x4] sm:$0xf]
    %v54 = vld [vmem:[#allocation3 + $0x8] sm:$0xf]
    %v55 = vld [vmem:[#allocation3 + $0xc] sm:$0xf]
    %v64 = vunpack.c.l.b16 %v44
    %v65 = vunpack.c.l.b16 %v45
    %v66 = vunpack.c.l.b16 %v46
    %v67 = vunpack.c.l.b16 %v47
    %v68 = vunpack.c.l.b16 %v48
    %v69 = vunpack.c.l.b16 %v49
    %v70 = vunpack.c.l.b16 %v50
    %v71 = vunpack.c.l.b16 %v51
    %v72 = vpack.c.b16 %v65, %v64
    %v73 = vpack.c.b16 %v67, %v66
    %v74 = vpack.c.b16 %v69, %v68
    %v75 = vpack.c.b16 %v71, %v70
    %v80 = vunpack.c.l.b16 %v52
    %v81 = vunpack.c.l.b16 %v53
    %v82 = vunpack.c.l.b16 %v54
    %v83 = vunpack.c.l.b16 %v55
    %v84 = vpack.c.b16 %v81, %v80
    %v85 = vpack.c.b16 %v83, %v82
    %vm88 = vcmask 261120
    %v90 = vsel %vm88, %v72, 0
    %v93 = vsel %vm88, %v73, 0
    %v96 = vsel %vm88, %v74, 0
    %v99 = vsel %vm88, %v75, 0
    %101 = vmatprep.subr.bf16.mxu0 0
    %102 = vmatpush1.bf16.msra.mxu0 %v84
    %103 = vmatprep.subr.bf16.mxu0 0
    %104 = vmatpush1.bf16.msra.mxu0 %v85
    %105 = vmatprep.subr.bf16.mxu0 0
    %106 = vmatpush1.bf16.msra.mxu0 0
    %107 = vmatprep.subr.bf16.mxu0 0
    %108 = vmatpush1.bf16.msra.mxu0 0
    %109 = vmatprep.subr.bf16.mxu0 0
    %110 = vmatpush1.bf16.msra.mxu0 0
    %111 = vmatprep.subr.bf16.mxu0 0
    %112 = vmatpush1.bf16.msra.mxu0 0
    %113 = vmatprep.subr.bf16.mxu0 0
    %114 = vmatpush1.bf16.msra.mxu0 0
    %115 = vmatprep.subr.bf16.mxu0 0
    %116 = vmatpush1.bf16.msra.mxu0 0
    %117 = vmatprep.subr.bf16.mxu0 0
    %118 = vmatpush1.bf16.msra.mxu0 0
    %119 = vmatprep.subr.bf16.mxu0 0
    %120 = vmatpush1.bf16.msra.mxu0 0
    %121 = vmatprep.subr.bf16.mxu0 0
    %122 = vmatpush1.bf16.msra.mxu0 0
    %123 = vmatprep.subr.bf16.mxu0 0
    %124 = vmatpush1.bf16.msra.mxu0 0
    %125 = vmatprep.subr.bf16.mxu0 0
    %126 = vmatpush1.bf16.msra.mxu0 0
    %127 = vmatprep.subr.bf16.mxu0 0
    %128 = vmatpush1.bf16.msra.mxu0 0
    %129 = vmatprep.subr.bf16.mxu0 0
    %130 = vmatpush1.bf16.msra.mxu0 0
    %131 = vmatprep.subr.bf16.mxu0 0
    %132 = vmatpush1.bf16.msra.mxu0 0
    %133 = vmatprep.mubr.bf16.mxu0 0
    %134 = vmatmul.mubr.bf16.gmra.mrb[0].mxu0 %v90
    %v135 = vpop.f32.mrb[0].mxu0
    %v136 = vadd.f32 0.0, %v135
    %v137 = vpop.f32.mrb[0].mxu0
    %v138 = vpop.f32.mrb[0].mxu0
    %v139 = vadd.f32 0.0, %v138
    %v140 = vpop.f32.mrb[0].mxu0
    %141 = vmatprep.mubr.bf16.mxu0 0
    %142 = vmatmul.mubr.bf16.gmra.mrb[0].mxu0 %v93
    %v143 = vpop.f32.mrb[0].mxu0
    %v144 = vadd.f32 0.0, %v143
    %v145 = vpop.f32.mrb[0].mxu0
    %v146 = vpop.f32.mrb[0].mxu0
    %v147 = vadd.f32 0.0, %v146
    %v148 = vpop.f32.mrb[0].mxu0
    %149 = vmatprep.mubr.bf16.mxu0 0
    %150 = vmatmul.mubr.bf16.gmra.mrb[0].mxu0 %v96
    %v151 = vpop.f32.mrb[0].mxu0
    %v152 = vadd.f32 0.0, %v151
    %v153 = vpop.f32.mrb[0].mxu0
    %v154 = vpop.f32.mrb[0].mxu0
    %v155 = vadd.f32 0.0, %v154
    %v156 = vpop.f32.mrb[0].mxu0
    %157 = vmatprep.mubr.bf16.mxu0 0
    %158 = vmatmul.mubr.bf16.gmra.mrb[0].mxu0 %v99
    %v159 = vpop.f32.mrb[0].mxu0
    %v160 = vadd.f32 0.0, %v159
    %v161 = vpop.f32.mrb[0].mxu0
    %v162 = vpop.f32.mrb[0].mxu0
    %v163 = vadd.f32 0.0, %v162
    %v164 = vpop.f32.mrb[0].mxu0
    %165 = vdwg.mxu0
    %vm166 = vcmask 982016
    %167 = vst.msk [vmem:[#allocation2] sm:$0xff] %vm166, %v136
    %168 = vst.msk [vmem:[#allocation2 + $0x8] sm:$0xff] %vm166, %v139
    %169 = vst.msk [vmem:[#allocation2 + $0x10] sm:$0xff] %vm166, %v144
    %170 = vst.msk [vmem:[#allocation2 + $0x18] sm:$0xff] %vm166, %v147
    %171 = vst.msk [vmem:[#allocation2 + $0x20] sm:$0xff] %vm166, %v152
    %172 = vst.msk [vmem:[#allocation2 + $0x28] sm:$0xff] %vm166, %v155
    %173 = vst.msk [vmem:[#allocation2 + $0x30] sm:$0xff] %vm166, %v160
    %174 = vst.msk [vmem:[#allocation2 + $0x38] sm:$0xff] %vm166, %v163
    %v175 = vld [vmem:[%s2] sm:$0xf]
    %v176 = vld [vmem:[%s2 + $0x4] sm:$0xf]
    %v177 = vld [vmem:[%s2 + $0x8] sm:$0xf]
    %v178 = vld [vmem:[%s2 + $0xc] sm:$0xf]
    %v179 = vld [vmem:[%s2 + $0x10] sm:$0xf]
    %v180 = vld [vmem:[%s3] sm:$0xf]
    %v181 = vld [vmem:[%s3 + $0x4] sm:$0xf]
    %v182 = vld [vmem:[%s3 + $0x8] sm:$0xf]
    %v183 = vld [vmem:[%s3 + $0xc] sm:$0xf]
    %v184 = vld [vmem:[%s3 + $0x10] sm:$0xf]
    %v185 = vld [vmem:[%s4] sm:$0xf]
    %v186 = vld [vmem:[%s4 + $0x4] sm:$0xf]
    %v187 = vld [vmem:[#allocation2] sm:$0xff]
    %v193 = vunpack.c.l.b16 %v175
    %v194 = vunpack.c.l.b16 %v176
    %v195 = vunpack.c.l.b16 %v177
    %v196 = vunpack.c.l.b16 %v178
    %v197 = vunpack.c.l.b16 %v179
    %v198 = vpack.c.b16 %v194, %v193
    %v199 = vpack.c.b16 %v196, %v195
    %v200 = vpack.c.b16 %v197, %v197
    %vm203 = vcmask 326656
    %v205 = vsel %vm203, 0, 0
    %vm207 = vcmask 1043456
    %v209 = vsel %vm207, %v200, 0
    %211 = vmatprep.subr.bf16.mxu0 0
    %212 = vmatpush1.bf16.msra.mxu0 %v198
    %213 = vmatprep.subr.bf16.mxu0 0
    %214 = vmatpush1.bf16.msra.mxu0 %v199
    %215 = vmatprep.subr.bf16.mxu0 0
    %216 = vmatpush1.bf16.msra.mxu0 %v209
    %217 = vmatprep.subr.bf16.mxu0 0
    %218 = vmatpush1.bf16.msra.mxu0 0
    %219 = vmatprep.subr.bf16.mxu0 0
    %220 = vmatpush1.bf16.msra.mxu0 0
    %221 = vmatprep.subr.bf16.mxu0 0
    %222 = vmatpush1.bf16.msra.mxu0 0
    %223 = vmatprep.subr.bf16.mxu0 0
    %224 = vmatpush1.bf16.msra.mxu0 0
    %225 = vmatprep.subr.bf16.mxu0 0
    %226 = vmatpush1.bf16.msra.mxu0 0
    %227 = vmatprep.subr.bf16.mxu0 0
    %228 = vmatpush1.bf16.msra.mxu0 0
    %229 = vmatprep.subr.bf16.mxu0 0
    %230 = vmatpush1.bf16.msra.mxu0 0
    %231 = vmatprep.subr.bf16.mxu0 0
    %232 = vmatpush1.bf16.msra.mxu0 0
    %233 = vmatprep.subr.bf16.mxu0 0
    %234 = vmatpush1.bf16.msra.mxu0 0
    %235 = vmatprep.subr.bf16.mxu0 0
    %236 = vmatpush1.bf16.msra.mxu0 0
    %237 = vmatprep.subr.bf16.mxu0 0
    %238 = vmatpush1.bf16.msra.mxu0 0
    %239 = vmatprep.subr.bf16.mxu0 0
    %240 = vmatpush1.bf16.msra.mxu0 0
    %241 = vmatprep.subr.bf16.mxu0 0
    %242 = vmatpush1.bf16.msra.mxu0 0
    %243 = vmatprep.mubr.bf16.mxu0 0
    %244 = vmatmul.mubr.bf16.gmra.mrb[0].mxu0 %v205
    %v245 = vpop.f32.mrb[0].mxu0
    %v246 = vadd.f32 0.0, %v245
    %v247 = vpop.f32.mrb[0].mxu0
    %v248 = vpop.f32.mrb[0].mxu0
    %v249 = vpop.f32.mrb[0].mxu0
    %250 = vdwg.mxu0
    %v251 = vadd.f32 %v187, %v246
    %v252 = vxor.u32 %v251, 2147483648
    %v253 = vmul.f32 %v252, 1.442695
    %v254 = vpow.pop %v253
    %v255 = vadd.f32 %v254, 1.0
    %v256 = vrcp.pop %v255
    %v257 = vmul.f32 1.0, %v256
    %259 = vrot.lane.b32.xlu0 %v246, 48
    %v260 = vpop.permute.xlu0 %259
    %v262 = vmul.f32 %v257, %v260
    %264 = vrot.lane.b32.xlu0 %v262, 80
    %v265 = vpop.permute.xlu0 %264
    %v267 = vadd.f32 %v187, %v265
    %v268 = vtanh.pop %v267
    %v269 = vsub.f32 1.0, %v257
    %271 = vrot.lane.b32.xlu0 %v268, 88
    %v272 = vpop.permute.xlu0 %271
    %v274 = vmul.f32 %v269, %v272
    %v275 = vmul.f32 %v257, 0.0
    %v276 = vadd.f32 %v274, %v275
    %278 = vrot.lane.b32.xlu0 %v276, 88
    %v279 = vpop.permute.xlu0 %278
    %281 = vst.msk [vmem:[#allocation6] sm:$0xff] %vm203, %v279
    %v282 = vpack.c.bf16 %v276, %v276
    %284 = vrot.lane.b32.xlu0 %v282, 88
    %v285 = vpop.permute.xlu0 %284
    %v291 = vunpack.c.l.b16 %v180
    %v292 = vunpack.c.l.b16 %v181
    %v293 = vunpack.c.l.b16 %v182
    %v294 = vunpack.c.l.b16 %v183
    %v295 = vunpack.c.l.b16 %v184
    %v296 = vpack.c.b16 %v292, %v291
    %v297 = vpack.c.b16 %v294, %v293
    %v298 = vpack.c.b16 %v295, %v295
    %v302 = vsel %vm203, %v285, 0
    %v305 = vsel %vm207, %v298, 0
    %307 = vmatprep.subr.bf16.mxu0 0
    %308 = vmatpush1.bf16.msra.mxu0 %v296
    %309 = vmatprep.subr.bf16.mxu0 0
    %310 = vmatpush1.bf16.msra.mxu0 %v297
    %311 = vmatprep.subr.bf16.mxu0 0
    %312 = vmatpush1.bf16.msra.mxu0 %v305
    %313 = vmatprep.subr.bf16.mxu0 0
    %314 = vmatpush1.bf16.msra.mxu0 0
    %315 = vmatprep.subr.bf16.mxu0 0
    %316 = vmatpush1.bf16.msra.mxu0 0
    %317 = vmatprep.subr.bf16.mxu0 0
    %318 = vmatpush1.bf16.msra.mxu0 0
    %319 = vmatprep.subr.bf16.mxu0 0
    %320 = vmatpush1.bf16.msra.mxu0 0
    %321 = vmatprep.subr.bf16.mxu0 0
    %322 = vmatpush1.bf16.msra.mxu0 0
    %323 = vmatprep.subr.bf16.mxu0 0
    %324 = vmatpush1.bf16.msra.mxu0 0
    %325 = vmatprep.subr.bf16.mxu0 0
    %326 = vmatpush1.bf16.msra.mxu0 0
    %327 = vmatprep.subr.bf16.mxu0 0
    %328 = vmatpush1.bf16.msra.mxu0 0
    %329 = vmatprep.subr.bf16.mxu0 0
    %330 = vmatpush1.bf16.msra.mxu0 0
    %331 = vmatprep.subr.bf16.mxu0 0
    %332 = vmatpush1.bf16.msra.mxu0 0
    %333 = vmatprep.subr.bf16.mxu0 0
    %334 = vmatpush1.bf16.msra.mxu0 0
    %335 = vmatprep.subr.bf16.mxu0 0
    %336 = vmatpush1.bf16.msra.mxu0 0
    %337 = vmatprep.subr.bf16.mxu0 0
    %338 = vmatpush1.bf16.msra.mxu0 0
    %339 = vmatprep.mubr.bf16.mxu0 0
    %340 = vmatmul.mubr.bf16.gmra.mrb[0].mxu0 %v302
    %v341 = vpop.f32.mrb[0].mxu0
    %v342 = vadd.f32 0.0, %v341
    %v343 = vpop.f32.mrb[0].mxu0
    %v344 = vpop.f32.mrb[0].mxu0
    %v345 = vpop.f32.mrb[0].mxu0
    %346 = vdwg.mxu0
    %v349 = vunpack.c.l.b16 %v185
    %v350 = vunpack.c.l.b16 %v186
    %v351 = vpack.c.b16 %v350, %v349
    %vm353 = vcmask 130048
    %v354 = vsel %vm353, 0, 0
    %356 = vmatprep.subr.bf16.mxu0 0
    %357 = vmatpush1.bf16.msra.mxu0 %v351
    %358 = vmatprep.subr.bf16.mxu0 0
    %359 = vmatpush1.bf16.msra.mxu0 0
    %360 = vmatprep.subr.bf16.mxu0 0
    %361 = vmatpush1.bf16.msra.mxu0 0
    %362 = vmatprep.subr.bf16.mxu0 0
    %363 = vmatpush1.bf16.msra.mxu0 0
    %364 = vmatprep.subr.bf16.mxu0 0
    %365 = vmatpush1.bf16.msra.mxu0 0
    %366 = vmatprep.subr.bf16.mxu0 0
    %367 = vmatpush1.bf16.msra.mxu0 0
    %368 = vmatprep.subr.bf16.mxu0 0
    %369 = vmatpush1.bf16.msra.mxu0 0
    %370 = vmatprep.subr.bf16.mxu0 0
    %371 = vmatpush1.bf16.msra.mxu0 0
    %372 = vmatprep.subr.bf16.mxu0 0
    %373 = vmatpush1.bf16.msra.mxu0 0
    %374 = vmatprep.subr.bf16.mxu0 0
    %375 = vmatpush1.bf16.msra.mxu0 0
    %376 = vmatprep.subr.bf16.mxu0 0
    %377 = vmatpush1.bf16.msra.mxu0 0
    %378 = vmatprep.subr.bf16.mxu0 0
    %379 = vmatpush1.bf16.msra.mxu0 0
    %380 = vmatprep.subr.bf16.mxu0 0
    %381 = vmatpush1.bf16.msra.mxu0 0
    %382 = vmatprep.subr.bf16.mxu0 0
    %383 = vmatpush1.bf16.msra.mxu0 0
    %384 = vmatprep.subr.bf16.mxu0 0
    %385 = vmatpush1.bf16.msra.mxu0 0
    %386 = vmatprep.subr.bf16.mxu0 0
    %387 = vmatpush1.bf16.msra.mxu0 0
    %388 = vmatprep.mubr.bf16.mxu0 0
    %389 = vmatmul.mubr.bf16.gmra.mrb[0].mxu0 %v354
    %v390 = vpop.f32.mrb[0].mxu0
    %v391 = vadd.f32 0.0, %v390
    %v392 = vpop.f32.mrb[0].mxu0
    %v393 = vpop.f32.mrb[0].mxu0
    %v394 = vpop.f32.mrb[0].mxu0
    %395 = vdwg.mxu0
    %v396 = vadd.f32 %v342, %v391
    %v397 = vxor.u32 %v396, 2147483648
    %v398 = vmul.f32 %v397, 1.442695
    %v399 = vpow.pop %v398
    %v400 = vadd.f32 %v399, 1.0
    %v401 = vrcp.pop %v400
    %v402 = vmul.f32 1.0, %v401
    %404 = vrot.lane.b32.xlu0 %v391, 96
    %v405 = vpop.permute.xlu0 %404
    %v407 = vmul.f32 %v402, %v405
    %409 = vrot.lane.b32.xlu0 %v407, 32
    %v410 = vpop.permute.xlu0 %409
    %v412 = vadd.f32 %v342, %v410
    %v413 = vtanh.pop %v412
    %v414 = vsub.f32 1.0, %v402
    %416 = vrot.lane.b32.xlu0 %v413, 112
    %v417 = vpop.permute.xlu0 %416
    %v419 = vmul.f32 %v414, %v417
    %v420 = vmul.f32 %v402, 0.0
    %v421 = vadd.f32 %v419, %v420
    %423 = vrot.lane.b32.xlu0 %v421, 24
    %v424 = vpop.permute.xlu0 %423
    %vm426 = vcmask 458048
    %427 = vst.msk [vmem:[#allocation6] sm:$0xff] %vm426, %v424
    %v428 = vxor.u32 %v421, 2147483648
    %v429 = vmul.f32 %v428, 1.442695
    %v430 = vpow.pop %v429
    %v431 = vadd.f32 %v430, 1.0
    %v432 = vrcp.pop %v431
    %v433 = vmul.f32 1.0, %v432
    %435 = vrot.lane.b32.xlu0 %v433, 40
    %v436 = vpop.permute.xlu0 %435
    %vm438 = vcmask 589248
    %439 = vst.msk [vmem:[#allocation6] sm:$0xff] %vm438, %v436
    %s440 = scalar_lea.vmem [#allocation2], 8
    %v441 = vld [vmem:[%s440] sm:$0xff]
    %442 = vmatprep.subr.bf16.mxu0 0
    %443 = vmatpush1.bf16.msra.mxu0 %v198
    %444 = vmatprep.subr.bf16.mxu0 0
    %445 = vmatpush1.bf16.msra.mxu0 %v199
    %446 = vmatprep.subr.bf16.mxu0 0
    %447 = vmatpush1.bf16.msra.mxu0 %v209
    %448 = vmatprep.subr.bf16.mxu0 0
    %449 = vmatpush1.bf16.msra.mxu0 0
    %450 = vmatprep.subr.bf16.mxu0 0
    %451 = vmatpush1.bf16.msra.mxu0 0
    %452 = vmatprep.subr.bf16.mxu0 0
    %453 = vmatpush1.bf16.msra.mxu0 0
    %454 = vmatprep.subr.bf16.mxu0 0
    %455 = vmatpush1.bf16.msra.mxu0 0
    %456 = vmatprep.subr.bf16.mxu0 0
    %457 = vmatpush1.bf16.msra.mxu0 0
    %458 = vmatprep.subr.bf16.mxu0 0
    %459 = vmatpush1.bf16.msra.mxu0 0
    %460 = vmatprep.subr.bf16.mxu0 0
    %461 = vmatpush1.bf16.msra.mxu0 0
    %462 = vmatprep.subr.bf16.mxu0 0
    %463 = vmatpush1.bf16.msra.mxu0 0
    %464 = vmatprep.subr.bf16.mxu0 0
    %465 = vmatpush1.bf16.msra.mxu0 0
    %466 = vmatprep.subr.bf16.mxu0 0
    %467 = vmatpush1.bf16.msra.mxu0 0
    %468 = vmatprep.subr.bf16.mxu0 0
    %469 = vmatpush1.bf16.msra.mxu0 0
    %470 = vmatprep.subr.bf16.mxu0 0
    %471 = vmatpush1.bf16.msra.mxu0 0
    %472 = vmatprep.subr.bf16.mxu0 0
    %473 = vmatpush1.bf16.msra.mxu0 0
    %474 = vmatprep.mubr.bf16.mxu0 0
    %475 = vmatmul.mubr.bf16.gmra.mrb[0].mxu0 %v302
    %v476 = vpop.f32.mrb[0].mxu0
    %v477 = vadd.f32 0.0, %v476
    %v478 = vpop.f32.mrb[0].mxu0
    %v479 = vpop.f32.mrb[0].mxu0
    %v480 = vpop.f32.mrb[0].mxu0
    %481 = vdwg.mxu0
    %v482 = vadd.f32 %v441, %v477
    %v483 = vxor.u32 %v482, 2147483648
    %v484 = vmul.f32 %v483, 1.442695
    %v485 = vpow.pop %v484
    %v486 = vadd.f32 %v485, 1.0
    %v487 = vrcp.pop %v486
    %v488 = vmul.f32 1.0, %v487
    %490 = vrot.lane.b32.xlu0 %v477, 48
    %v491 = vpop.permute.xlu0 %490
    %v493 = vmul.f32 %v488, %v491
    %495 = vrot.lane.b32.xlu0 %v493, 80
    %v496 = vpop.permute.xlu0 %495
    %v498 = vadd.f32 %v441, %v496
    %v499 = vtanh.pop %v498
    %v500 = vsub.f32 1.0, %v488
    %502 = vrot.lane.b32.xlu0 %v499, 88
    %v503 = vpop.permute.xlu0 %502
    %v505 = vmul.f32 %v500, %v503
    %v506 = vmul.f32 %v488, %v276
    %v507 = vadd.f32 %v505, %v506
    %509 = vrot.lane.b32.xlu0 %v507, 88
    %v510 = vpop.permute.xlu0 %509
    %s512 = scalar_lea.vmem [#allocation6], 8
    %513 = vst.msk [vmem:[%s512] sm:$0xff] %vm203, %v510
    %v514 = vpack.c.bf16 %v507, %v507
    %516 = vrot.lane.b32.xlu0 %v514, 88
    %v517 = vpop.permute.xlu0 %516
    %v519 = vsel %vm203, %v517, 0
    %521 = vmatprep.subr.bf16.mxu0 0
    %522 = vmatpush1.bf16.msra.mxu0 %v296
    %523 = vmatprep.subr.bf16.mxu0 0
    %524 = vmatpush1.bf16.msra.mxu0 %v297
    %525 = vmatprep.subr.bf16.mxu0 0
    %526 = vmatpush1.bf16.msra.mxu0 %v305
    %527 = vmatprep.subr.bf16.mxu0 0
    %528 = vmatpush1.bf16.msra.mxu0 0
    %529 = vmatprep.subr.bf16.mxu0 0
    %530 = vmatpush1.bf16.msra.mxu0 0
    %531 = vmatprep.subr.bf16.mxu0 0
    %532 = vmatpush1.bf16.msra.mxu0 0
    %533 = vmatprep.subr.bf16.mxu0 0
    %534 = vmatpush1.bf16.msra.mxu0 0
    %535 = vmatprep.subr.bf16.mxu0 0
    %536 = vmatpush1.bf16.msra.mxu0 0
    %537 = vmatprep.subr.bf16.mxu0 0
    %538 = vmatpush1.bf16.msra.mxu0 0
    %539 = vmatprep.subr.bf16.mxu0 0
    %540 = vmatpush1.bf16.msra.mxu0 0
    %541 = vmatprep.subr.bf16.mxu0 0
    %542 = vmatpush1.bf16.msra.mxu0 0
    %543 = vmatprep.subr.bf16.mxu0 0
    %544 = vmatpush1.bf16.msra.mxu0 0
    %545 = vmatprep.subr.bf16.mxu0 0
    %546 = vmatpush1.bf16.msra.mxu0 0
    %547 = vmatprep.subr.bf16.mxu0 0
    %548 = vmatpush1.bf16.msra.mxu0 0
    %549 = vmatprep.subr.bf16.mxu0 0
    %550 = vmatpush1.bf16.msra.mxu0 0
    %551 = vmatprep.subr.bf16.mxu0 0
    %552 = vmatpush1.bf16.msra.mxu0 0
    %553 = vmatprep.mubr.bf16.mxu0 0
    %554 = vmatmul.mubr.bf16.gmra.mrb[0].mxu0 %v519
    %v555 = vpop.f32.mrb[0].mxu0
    %v556 = vadd.f32 0.0, %v555
    %v557 = vpop.f32.mrb[0].mxu0
    %v558 = vpop.f32.mrb[0].mxu0
    %v559 = vpop.f32.mrb[0].mxu0
    %560 = vdwg.mxu0
    %v561 = vpack.c.bf16 %v421, %v421
    %563 = vrot.lane.b32.xlu0 %v561, 112
    %v564 = vpop.permute.xlu0 %563
    %v566 = vsel %vm353, %v564, 0
    %568 = vmatprep.subr.bf16.mxu0 0
    %569 = vmatpush1.bf16.msra.mxu0 %v351
    %570 = vmatprep.subr.bf16.mxu0 0
    %571 = vmatpush1.bf16.msra.mxu0 0
    %572 = vmatprep.subr.bf16.mxu0 0
    %573 = vmatpush1.bf16.msra.mxu0 0
    %574 = vmatprep.subr.bf16.mxu0 0
    %575 = vmatpush1.bf16.msra.mxu0 0
    %576 = vmatprep.subr.bf16.mxu0 0
    %577 = vmatpush1.bf16.msra.mxu0 0
    %578 = vmatprep.subr.bf16.mxu0 0
    %579 = vmatpush1.bf16.msra.mxu0 0
    %580 = vmatprep.subr.bf16.mxu0 0
    %581 = vmatpush1.bf16.msra.mxu0 0
    %582 = vmatprep.subr.bf16.mxu0 0
    %583 = vmatpush1.bf16.msra.mxu0 0
    %584 = vmatprep.subr.bf16.mxu0 0
    %585 = vmatpush1.bf16.msra.mxu0 0
    %586 = vmatprep.subr.bf16.mxu0 0
    %587 = vmatpush1.bf16.msra.mxu0 0
    %588 = vmatprep.subr.bf16.mxu0 0
    %589 = vmatpush1.bf16.msra.mxu0 0
    %590 = vmatprep.subr.bf16.mxu0 0
    %591 = vmatpush1.bf16.msra.mxu0 0
    %592 = vmatprep.subr.bf16.mxu0 0
    %593 = vmatpush1.bf16.msra.mxu0 0
    %594 = vmatprep.subr.bf16.mxu0 0
    %595 = vmatpush1.bf16.msra.mxu0 0
    %596 = vmatprep.subr.bf16.mxu0 0
    %597 = vmatpush1.bf16.msra.mxu0 0
    %598 = vmatprep.subr.bf16.mxu0 0
    %599 = vmatpush1.bf16.msra.mxu0 0
    %600 = vmatprep.mubr.bf16.mxu0 0
    %601 = vmatmul.mubr.bf16.gmra.mrb[0].mxu0 %v566
    %v602 = vpop.f32.mrb[0].mxu0
    %v603 = vadd.f32 0.0, %v602
    %v604 = vpop.f32.mrb[0].mxu0
    %v605 = vpop.f32.mrb[0].mxu0
    %v606 = vpop.f32.mrb[0].mxu0
    %607 = vdwg.mxu0
    %v608 = vadd.f32 %v556, %v603
    %v609 = vxor.u32 %v608, 2147483648
    %v610 = vmul.f32 %v609, 1.442695
    %v611 = vpow.pop %v610
    %v612 = vadd.f32 %v611, 1.0
    %v613 = vrcp.pop %v612
    %v614 = vmul.f32 1.0, %v613
    %616 = vrot.lane.b32.xlu0 %v603, 96
    %v617 = vpop.permute.xlu0 %616
    %v619 = vmul.f32 %v614, %v617
    %621 = vrot.lane.b32.xlu0 %v619, 32
    %v622 = vpop.permute.xlu0 %621
    %v624 = vadd.f32 %v556, %v622
    %v625 = vtanh.pop %v624
    %v626 = vsub.f32 1.0, %v614
    %628 = vrot.lane.b32.xlu0 %v625, 112
    %v629 = vpop.permute.xlu0 %628
    %v631 = vmul.f32 %v626, %v629
    %v632 = vmul.f32 %v614, %v421
    %v633 = vadd.f32 %v631, %v632
    %635 = vrot.lane.b32.xlu0 %v633, 24
    %v636 = vpop.permute.xlu0 %635
    %638 = vst.msk [vmem:[%s512] sm:$0xff] %vm426, %v636
    %v639 = vxor.u32 %v633, 2147483648
    %v640 = vmul.f32 %v639, 1.442695
    %v641 = vpow.pop %v640
    %v642 = vadd.f32 %v641, 1.0
    %v643 = vrcp.pop %v642
    %v644 = vmul.f32 1.0, %v643
    %646 = vrot.lane.b32.xlu0 %v644, 40
    %v647 = vpop.permute.xlu0 %646
    %649 = vst.msk [vmem:[%s512] sm:$0xff] %vm438, %v647
    %s650 = scalar_lea.vmem [#allocation2], 16
    %v651 = vld [vmem:[%s650] sm:$0xff]
    %652 = vmatprep.subr.bf16.mxu0 0
    %653 = vmatpush1.bf16.msra.mxu0 %v198
    %654 = vmatprep.subr.bf16.mxu0 0
    %655 = vmatpush1.bf16.msra.mxu0 %v199
    %656 = vmatprep.subr.bf16.mxu0 0
    %657 = vmatpush1.bf16.msra.mxu0 %v209
    %658 = vmatprep.subr.bf16.mxu0 0
    %659 = vmatpush1.bf16.msra.mxu0 0
    %660 = vmatprep.subr.bf16.mxu0 0
    %661 = vmatpush1.bf16.msra.mxu0 0
    %662 = vmatprep.subr.bf16.mxu0 0
    %663 = vmatpush1.bf16.msra.mxu0 0
    %664 = vmatprep.subr.bf16.mxu0 0
    %665 = vmatpush1.bf16.msra.mxu0 0
    %666 = vmatprep.subr.bf16.mxu0 0
    %667 = vmatpush1.bf16.msra.mxu0 0
    %668 = vmatprep.subr.bf16.mxu0 0
    %669 = vmatpush1.bf16.msra.mxu0 0
    %670 = vmatprep.subr.bf16.mxu0 0
    %671 = vmatpush1.bf16.msra.mxu0 0
    %672 = vmatprep.subr.bf16.mxu0 0
    %673 = vmatpush1.bf16.msra.mxu0 0
    %674 = vmatprep.subr.bf16.mxu0 0
    %675 = vmatpush1.bf16.msra.mxu0 0
    %676 = vmatprep.subr.bf16.mxu0 0
    %677 = vmatpush1.bf16.msra.mxu0 0
    %678 = vmatprep.subr.bf16.mxu0 0
    %679 = vmatpush1.bf16.msra.mxu0 0
    %680 = vmatprep.subr.bf16.mxu0 0
    %681 = vmatpush1.bf16.msra.mxu0 0
    %682 = vmatprep.subr.bf16.mxu0 0
    %683 = vmatpush1.bf16.msra.mxu0 0
    %684 = vmatprep.mubr.bf16.mxu0 0
    %685 = vmatmul.mubr.bf16.gmra.mrb[0].mxu0 %v519
    %v686 = vpop.f32.mrb[0].mxu0
    %v687 = vadd.f32 0.0, %v686
    %v688 = vpop.f32.mrb[0].mxu0
    %v689 = vpop.f32.mrb[0].mxu0
    %v690 = vpop.f32.mrb[0].mxu0
    %691 = vdwg.mxu0
    %v692 = vadd.f32 %v651, %v687
    %v693 = vxor.u32 %v692, 2147483648
    %v694 = vmul.f32 %v693, 1.442695
    %v695 = vpow.pop %v694
    %v696 = vadd.f32 %v695, 1.0
    %v697 = vrcp.pop %v696
    %v698 = vmul.f32 1.0, %v697
    %700 = vrot.lane.b32.xlu0 %v687, 48
    %v701 = vpop.permute.xlu0 %700
    %v703 = vmul.f32 %v698, %v701
    %705 = vrot.lane.b32.xlu0 %v703, 80
    %v706 = vpop.permute.xlu0 %705
    %v708 = vadd.f32 %v651, %v706
    %v709 = vtanh.pop %v708
    %v710 = vsub.f32 1.0, %v698
    %712 = vrot.lane.b32.xlu0 %v709, 88
    %v713 = vpop.permute.xlu0 %712
    %v715 = vmul.f32 %v710, %v713
    %v716 = vmul.f32 %v698, %v507
    %v717 = vadd.f32 %v715, %v716
    %719 = vrot.lane.b32.xlu0 %v717, 88
    %v720 = vpop.permute.xlu0 %719
    %s722 = scalar_lea.vmem [#allocation6], 16
    %723 = vst.msk [vmem:[%s722] sm:$0xff] %vm203, %v720
    %v724 = vpack.c.bf16 %v717, %v717
    %726 = vrot.lane.b32.xlu0 %v724, 88
    %v727 = vpop.permute.xlu0 %726
    %v729 = vsel %vm203, %v727, 0
    %731 = vmatprep.subr.bf16.mxu0 0
    %732 = vmatpush1.bf16.msra.mxu0 %v296
    %733 = vmatprep.subr.bf16.mxu0 0
    %734 = vmatpush1.bf16.msra.mxu0 %v297
    %735 = vmatprep.subr.bf16.mxu0 0
    %736 = vmatpush1.bf16.msra.mxu0 %v305
    %737 = vmatprep.subr.bf16.mxu0 0
    %738 = vmatpush1.bf16.msra.mxu0 0
    %739 = vmatprep.subr.bf16.mxu0 0
    %740 = vmatpush1.bf16.msra.mxu0 0
    %741 = vmatprep.subr.bf16.mxu0 0
    %742 = vmatpush1.bf16.msra.mxu0 0
    %743 = vmatprep.subr.bf16.mxu0 0
    %744 = vmatpush1.bf16.msra.mxu0 0
    %745 = vmatprep.subr.bf16.mxu0 0
    %746 = vmatpush1.bf16.msra.mxu0 0
    %747 = vmatprep.subr.bf16.mxu0 0
    %748 = vmatpush1.bf16.msra.mxu0 0
    %749 = vmatprep.subr.bf16.mxu0 0
    %750 = vmatpush1.bf16.msra.mxu0 0
    %751 = vmatprep.subr.bf16.mxu0 0
    %752 = vmatpush1.bf16.msra.mxu0 0
    %753 = vmatprep.subr.bf16.mxu0 0
    %754 = vmatpush1.bf16.msra.mxu0 0
    %755 = vmatprep.subr.bf16.mxu0 0
    %756 = vmatpush1.bf16.msra.mxu0 0
    %757 = vmatprep.subr.bf16.mxu0 0
    %758 = vmatpush1.bf16.msra.mxu0 0
    %759 = vmatprep.subr.bf16.mxu0 0
    %760 = vmatpush1.bf16.msra.mxu0 0
    %761 = vmatprep.subr.bf16.mxu0 0
    %762 = vmatpush1.bf16.msra.mxu0 0
    %763 = vmatprep.mubr.bf16.mxu0 0
    %764 = vmatmul.mubr.bf16.gmra.mrb[0].mxu0 %v729
    %v765 = vpop.f32.mrb[0].mxu0
    %v766 = vadd.f32 0.0, %v765
    %v767 = vpop.f32.mrb[0].mxu0
    %v768 = vpop.f32.mrb[0].mxu0
    %v769 = vpop.f32.mrb[0].mxu0
    %770 = vdwg.mxu0
    %v771 = vpack.c.bf16 %v633, %v633
    %773 = vrot.lane.b32.xlu0 %v771, 112
    %v774 = vpop.permute.xlu0 %773
    %v776 = vsel %vm353, %v774, 0
    %778 = vmatprep.subr.bf16.mxu0 0
    %779 = vmatpush1.bf16.msra.mxu0 %v351
    %780 = vmatprep.subr.bf16.mxu0 0
    %781 = vmatpush1.bf16.msra.mxu0 0
    %782 = vmatprep.subr.bf16.mxu0 0
    %783 = vmatpush1.bf16.msra.mxu0 0
    %784 = vmatprep.subr.bf16.mxu0 0
    %785 = vmatpush1.bf16.msra.mxu0 0
    %786 = vmatprep.subr.bf16.mxu0 0
    %787 = vmatpush1.bf16.msra.mxu0 0
    %788 = vmatprep.subr.bf16.mxu0 0
    %789 = vmatpush1.bf16.msra.mxu0 0
    %790 = vmatprep.subr.bf16.mxu0 0
    %791 = vmatpush1.bf16.msra.mxu0 0
    %792 = vmatprep.subr.bf16.mxu0 0
    %793 = vmatpush1.bf16.msra.mxu0 0
    %794 = vmatprep.subr.bf16.mxu0 0
    %795 = vmatpush1.bf16.msra.mxu0 0
    %796 = vmatprep.subr.bf16.mxu0 0
    %797 = vmatpush1.bf16.msra.mxu0 0
    %798 = vmatprep.subr.bf16.mxu0 0
    %799 = vmatpush1.bf16.msra.mxu0 0
    %800 = vmatprep.subr.bf16.mxu0 0
    %801 = vmatpush1.bf16.msra.mxu0 0
    %802 = vmatprep.subr.bf16.mxu0 0
    %803 = vmatpush1.bf16.msra.mxu0 0
    %804 = vmatprep.subr.bf16.mxu0 0
    %805 = vmatpush1.bf16.msra.mxu0 0
    %806 = vmatprep.subr.bf16.mxu0 0
    %807 = vmatpush1.bf16.msra.mxu0 0
    %808 = vmatprep.subr.bf16.mxu0 0
    %809 = vmatpush1.bf16.msra.mxu0 0
    %810 = vmatprep.mubr.bf16.mxu0 0
    %811 = vmatmul.mubr.bf16.gmra.mrb[0].mxu0 %v776
    %v812 = vpop.f32.mrb[0].mxu0
    %v813 = vadd.f32 0.0, %v812
    %v814 = vpop.f32.mrb[0].mxu0
    %v815 = vpop.f32.mrb[0].mxu0
    %v816 = vpop.f32.mrb[0].mxu0
    %817 = vdwg.mxu0
    %v818 = vadd.f32 %v766, %v813
    %v819 = vxor.u32 %v818, 2147483648
    %v820 = vmul.f32 %v819, 1.442695
    %v821 = vpow.pop %v820
    %v822 = vadd.f32 %v821, 1.0
    %v823 = vrcp.pop %v822
    %v824 = vmul.f32 1.0, %v823
    %826 = vrot.lane.b32.xlu0 %v813, 96
    %v827 = vpop.permute.xlu0 %826
    %v829 = vmul.f32 %v824, %v827
    %831 = vrot.lane.b32.xlu0 %v829, 32
    %v832 = vpop.permute.xlu0 %831
    %v834 = vadd.f32 %v766, %v832
    %v835 = vtanh.pop %v834
    %v836 = vsub.f32 1.0, %v824
    %838 = vrot.lane.b32.xlu0 %v835, 112
    %v839 = vpop.permute.xlu0 %838
    %v841 = vmul.f32 %v836, %v839
    %v842 = vmul.f32 %v824, %v633
    %v843 = vadd.f32 %v841, %v842
    %845 = vrot.lane.b32.xlu0 %v843, 24
    %v846 = vpop.permute.xlu0 %845
    %848 = vst.msk [vmem:[%s722] sm:$0xff] %vm426, %v846
    %v849 = vxor.u32 %v843, 2147483648
    %v850 = vmul.f32 %v849, 1.442695
    %v851 = vpow.pop %v850
    %v852 = vadd.f32 %v851, 1.0
    %v853 = vrcp.pop %v852
    %v854 = vmul.f32 1.0, %v853
    %856 = vrot.lane.b32.xlu0 %v854, 40
    %v857 = vpop.permute.xlu0 %856
    %859 = vst.msk [vmem:[%s722] sm:$0xff] %vm438, %v857
    %s860 = scalar_lea.vmem [#allocation2], 24
    %v861 = vld [vmem:[%s860] sm:$0xff]
    %862 = vmatprep.subr.bf16.mxu0 0
    %863 = vmatpush1.bf16.msra.mxu0 %v198
    %864 = vmatprep.subr.bf16.mxu0 0
    %865 = vmatpush1.bf16.msra.mxu0 %v199
    %866 = vmatprep.subr.bf16.mxu0 0
    %867 = vmatpush1.bf16.msra.mxu0 %v209
    %868 = vmatprep.subr.bf16.mxu0 0
    %869 = vmatpush1.bf16.msra.mxu0 0
    %870 = vmatprep.subr.bf16.mxu0 0
    %871 = vmatpush1.bf16.msra.mxu0 0
    %872 = vmatprep.subr.bf16.mxu0 0
    %873 = vmatpush1.bf16.msra.mxu0 0
    %874 = vmatprep.subr.bf16.mxu0 0
    %875 = vmatpush1.bf16.msra.mxu0 0
    %876 = vmatprep.subr.bf16.mxu0 0
    %877 = vmatpush1.bf16.msra.mxu0 0
    %878 = vmatprep.subr.bf16.mxu0 0
    %879 = vmatpush1.bf16.msra.mxu0 0
    %880 = vmatprep.subr.bf16.mxu0 0
    %881 = vmatpush1.bf16.msra.mxu0 0
    %882 = vmatprep.subr.bf16.mxu0 0
    %883 = vmatpush1.bf16.msra.mxu0 0
    %884 = vmatprep.subr.bf16.mxu0 0
    %885 = vmatpush1.bf16.msra.mxu0 0
    %886 = vmatprep.subr.bf16.mxu0 0
    %887 = vmatpush1.bf16.msra.mxu0 0
    %888 = vmatprep.subr.bf16.mxu0 0
    %889 = vmatpush1.bf16.msra.mxu0 0
    %890 = vmatprep.subr.bf16.mxu0 0
    %891 = vmatpush1.bf16.msra.mxu0 0
    %892 = vmatprep.subr.bf16.mxu0 0
    %893 = vmatpush1.bf16.msra.mxu0 0
    %894 = vmatprep.mubr.bf16.mxu0 0
    %895 = vmatmul.mubr.bf16.gmra.mrb[0].mxu0 %v729
    %v896 = vpop.f32.mrb[0].mxu0
    %v897 = vadd.f32 0.0, %v896
    %v898 = vpop.f32.mrb[0].mxu0
    %v899 = vpop.f32.mrb[0].mxu0
    %v900 = vpop.f32.mrb[0].mxu0
    %901 = vdwg.mxu0
    %v902 = vadd.f32 %v861, %v897
    %v903 = vxor.u32 %v902, 2147483648
    %v904 = vmul.f32 %v903, 1.442695
    %v905 = vpow.pop %v904
    %v906 = vadd.f32 %v905, 1.0
    %v907 = vrcp.pop %v906
    %v908 = vmul.f32 1.0, %v907
    %910 = vrot.lane.b32.xlu0 %v897, 48
    %v911 = vpop.permute.xlu0 %910
    %v913 = vmul.f32 %v908, %v911
    %915 = vrot.lane.b32.xlu0 %v913, 80
    %v916 = vpop.permute.xlu0 %915
    %v918 = vadd.f32 %v861, %v916
    %v919 = vtanh.pop %v918
    %v920 = vsub.f32 1.0, %v908
    %922 = vrot.lane.b32.xlu0 %v919, 88
    %v923 = vpop.permute.xlu0 %922
    %v925 = vmul.f32 %v920, %v923
    %v926 = vmul.f32 %v908, %v717
    %v927 = vadd.f32 %v925, %v926
    %929 = vrot.lane.b32.xlu0 %v927, 88
    %v930 = vpop.permute.xlu0 %929
    %s932 = scalar_lea.vmem [#allocation6], 24
    %933 = vst.msk [vmem:[%s932] sm:$0xff] %vm203, %v930
    %v934 = vpack.c.bf16 %v927, %v927
    %936 = vrot.lane.b32.xlu0 %v934, 88
    %v937 = vpop.permute.xlu0 %936
    %v939 = vsel %vm203, %v937, 0
    %941 = vmatprep.subr.bf16.mxu0 0
    %942 = vmatpush1.bf16.msra.mxu0 %v296
    %943 = vmatprep.subr.bf16.mxu0 0
    %944 = vmatpush1.bf16.msra.mxu0 %v297
    %945 = vmatprep.subr.bf16.mxu0 0
    %946 = vmatpush1.bf16.msra.mxu0 %v305
    %947 = vmatprep.subr.bf16.mxu0 0
    %948 = vmatpush1.bf16.msra.mxu0 0
    %949 = vmatprep.subr.bf16.mxu0 0
    %950 = vmatpush1.bf16.msra.mxu0 0
    %951 = vmatprep.subr.bf16.mxu0 0
    %952 = vmatpush1.bf16.msra.mxu0 0
    %953 = vmatprep.subr.bf16.mxu0 0
    %954 = vmatpush1.bf16.msra.mxu0 0
    %955 = vmatprep.subr.bf16.mxu0 0
    %956 = vmatpush1.bf16.msra.mxu0 0
    %957 = vmatprep.subr.bf16.mxu0 0
    %958 = vmatpush1.bf16.msra.mxu0 0
    %959 = vmatprep.subr.bf16.mxu0 0
    %960 = vmatpush1.bf16.msra.mxu0 0
    %961 = vmatprep.subr.bf16.mxu0 0
    %962 = vmatpush1.bf16.msra.mxu0 0
    %963 = vmatprep.subr.bf16.mxu0 0
    %964 = vmatpush1.bf16.msra.mxu0 0
    %965 = vmatprep.subr.bf16.mxu0 0
    %966 = vmatpush1.bf16.msra.mxu0 0
    %967 = vmatprep.subr.bf16.mxu0 0
    %968 = vmatpush1.bf16.msra.mxu0 0
    %969 = vmatprep.subr.bf16.mxu0 0
    %970 = vmatpush1.bf16.msra.mxu0 0
    %971 = vmatprep.subr.bf16.mxu0 0
    %972 = vmatpush1.bf16.msra.mxu0 0
    %973 = vmatprep.mubr.bf16.mxu0 0
    %974 = vmatmul.mubr.bf16.gmra.mrb[0].mxu0 %v939
    %v975 = vpop.f32.mrb[0].mxu0
    %v976 = vadd.f32 0.0, %v975
    %v977 = vpop.f32.mrb[0].mxu0
    %v978 = vpop.f32.mrb[0].mxu0
    %v979 = vpop.f32.mrb[0].mxu0
    %980 = vdwg.mxu0
    %v981 = vpack.c.bf16 %v843, %v843
    %983 = vrot.lane.b32.xlu0 %v981, 112
    %v984 = vpop.permute.xlu0 %983
    %v986 = vsel %vm353, %v984, 0
    %988 = vmatprep.subr.bf16.mxu0 0
    %989 = vmatpush1.bf16.msra.mxu0 %v351
    %990 = vmatprep.subr.bf16.mxu0 0
    %991 = vmatpush1.bf16.msra.mxu0 0
    %992 = vmatprep.subr.bf16.mxu0 0
    %993 = vmatpush1.bf16.msra.mxu0 0
    %994 = vmatprep.subr.bf16.mxu0 0
    %995 = vmatpush1.bf16.msra.mxu0 0
    %996 = vmatprep.subr.bf16.mxu0 0
    %997 = vmatpush1.bf16.msra.mxu0 0
    %998 = vmatprep.subr.bf16.mxu0 0
    %999 = vmatpush1.bf16.msra.mxu0 0
    %1000 = vmatprep.subr.bf16.mxu0 0
    %1001 = vmatpush1.bf16.msra.mxu0 0
    %1002 = vmatprep.subr.bf16.mxu0 0
    %1003 = vmatpush1.bf16.msra.mxu0 0
    %1004 = vmatprep.subr.bf16.mxu0 0
    %1005 = vmatpush1.bf16.msra.mxu0 0
    %1006 = vmatprep.subr.bf16.mxu0 0
    %1007 = vmatpush1.bf16.msra.mxu0 0
    %1008 = vmatprep.subr.bf16.mxu0 0
    %1009 = vmatpush1.bf16.msra.mxu0 0
    %1010 = vmatprep.subr.bf16.mxu0 0
    %1011 = vmatpush1.bf16.msra.mxu0 0
    %1012 = vmatprep.subr.bf16.mxu0 0
    %1013 = vmatpush1.bf16.msra.mxu0 0
    %1014 = vmatprep.subr.bf16.mxu0 0
    %1015 = vmatpush1.bf16.msra.mxu0 0
    %1016 = vmatprep.subr.bf16.mxu0 0
    %1017 = vmatpush1.bf16.msra.mxu0 0
    %1018 = vmatprep.subr.bf16.mxu0 0
    %1019 = vmatpush1.bf16.msra.mxu0 0
    %1020 = vmatprep.mubr.bf16.mxu0 0
    %1021 = vmatmul.mubr.bf16.gmra.mrb[0].mxu0 %v986
    %v1022 = vpop.f32.mrb[0].mxu0
    %v1023 = vadd.f32 0.0, %v1022
    %v1024 = vpop.f32.mrb[0].mxu0
    %v1025 = vpop.f32.mrb[0].mxu0
    %v1026 = vpop.f32.mrb[0].mxu0
    %1027 = vdwg.mxu0
    %v1028 = vadd.f32 %v976, %v1023
    %v1029 = vxor.u32 %v1028, 2147483648
    %v1030 = vmul.f32 %v1029, 1.442695
    %v1031 = vpow.pop %v1030
    %v1032 = vadd.f32 %v1031, 1.0
    %v1033 = vrcp.pop %v1032
    %v1034 = vmul.f32 1.0, %v1033
    %1036 = vrot.lane.b32.xlu0 %v1023, 96
    %v1037 = vpop.permute.xlu0 %1036
    %v1039 = vmul.f32 %v1034, %v1037
    %1041 = vrot.lane.b32.xlu0 %v1039, 32
    %v1042 = vpop.permute.xlu0 %1041
    %v1044 = vadd.f32 %v976, %v1042
    %v1045 = vtanh.pop %v1044
    %v1046 = vsub.f32 1.0, %v1034
    %1048 = vrot.lane.b32.xlu0 %v1045, 112
    %v1049 = vpop.permute.xlu0 %1048
    %v1051 = vmul.f32 %v1046, %v1049
    %v1052 = vmul.f32 %v1034, %v843
    %v1053 = vadd.f32 %v1051, %v1052
    %1055 = vrot.lane.b32.xlu0 %v1053, 24
    %v1056 = vpop.permute.xlu0 %1055
    %1058 = vst.msk [vmem:[%s932] sm:$0xff] %vm426, %v1056
    %v1059 = vxor.u32 %v1053, 2147483648
    %v1060 = vmul.f32 %v1059, 1.442695
    %v1061 = vpow.pop %v1060
    %v1062 = vadd.f32 %v1061, 1.0
    %v1063 = vrcp.pop %v1062
    %v1064 = vmul.f32 1.0, %v1063
    %1066 = vrot.lane.b32.xlu0 %v1064, 40
    %v1067 = vpop.permute.xlu0 %1066
    %1069 = vst.msk [vmem:[%s932] sm:$0xff] %vm438, %v1067
    %s1070 = scalar_lea.vmem [#allocation2], 32
    %v1071 = vld [vmem:[%s1070] sm:$0xff]
    %1072 = vmatprep.subr.bf16.mxu0 0
    %1073 = vmatpush1.bf16.msra.mxu0 %v198
    %1074 = vmatprep.subr.bf16.mxu0 0
    %1075 = vmatpush1.bf16.msra.mxu0 %v199
    %1076 = vmatprep.subr.bf16.mxu0 0
    %1077 = vmatpush1.bf16.msra.mxu0 %v209
    %1078 = vmatprep.subr.bf16.mxu0 0
    %1079 = vmatpush1.bf16.msra.mxu0 0
    %1080 = vmatprep.subr.bf16.mxu0 0
    %1081 = vmatpush1.bf16.msra.mxu0 0
    %1082 = vmatprep.subr.bf16.mxu0 0
    %1083 = vmatpush1.bf16.msra.mxu0 0
    %1084 = vmatprep.subr.bf16.mxu0 0
    %1085 = vmatpush1.bf16.msra.mxu0 0
    %1086 = vmatprep.subr.bf16.mxu0 0
    %1087 = vmatpush1.bf16.msra.mxu0 0
    %1088 = vmatprep.subr.bf16.mxu0 0
    %1089 = vmatpush1.bf16.msra.mxu0 0
    %1090 = vmatprep.subr.bf16.mxu0 0
    %1091 = vmatpush1.bf16.msra.mxu0 0
    %1092 = vmatprep.subr.bf16.mxu0 0
    %1093 = vmatpush1.bf16.msra.mxu0 0
    %1094 = vmatprep.subr.bf16.mxu0 0
    %1095 = vmatpush1.bf16.msra.mxu0 0
    %1096 = vmatprep.subr.bf16.mxu0 0
    %1097 = vmatpush1.bf16.msra.mxu0 0
    %1098 = vmatprep.subr.bf16.mxu0 0
    %1099 = vmatpush1.bf16.msra.mxu0 0
    %1100 = vmatprep.subr.bf16.mxu0 0
    %1101 = vmatpush1.bf16.msra.mxu0 0
    %1102 = vmatprep.subr.bf16.mxu0 0
    %1103 = vmatpush1.bf16.msra.mxu0 0
    %1104 = vmatprep.mubr.bf16.mxu0 0
    %1105 = vmatmul.mubr.bf16.gmra.mrb[0].mxu0 %v939
    %v1106 = vpop.f32.mrb[0].mxu0
    %v1107 = vadd.f32 0.0, %v1106
    %v1108 = vpop.f32.mrb[0].mxu0
    %v1109 = vpop.f32.mrb[0].mxu0
    %v1110 = vpop.f32.mrb[0].mxu0
    %1111 = vdwg.mxu0
    %v1112 = vadd.f32 %v1071, %v1107
    %v1113 = vxor.u32 %v1112, 2147483648
    %v1114 = vmul.f32 %v1113, 1.442695
    %v1115 = vpow.pop %v1114
    %v1116 = vadd.f32 %v1115, 1.0
    %v1117 = vrcp.pop %v1116
    %v1118 = vmul.f32 1.0, %v1117
    %1120 = vrot.lane.b32.xlu0 %v1107, 48
    %v1121 = vpop.permute.xlu0 %1120
    %v1123 = vmul.f32 %v1118, %v1121
    %1125 = vrot.lane.b32.xlu0 %v1123, 80
    %v1126 = vpop.permute.xlu0 %1125
    %v1128 = vadd.f32 %v1071, %v1126
    %v1129 = vtanh.pop %v1128
    %v1130 = vsub.f32 1.0, %v1118
    %1132 = vrot.lane.b32.xlu0 %v1129, 88
    %v1133 = vpop.permute.xlu0 %1132
    %v1135 = vmul.f32 %v1130, %v1133
    %v1136 = vmul.f32 %v1118, %v927
    %v1137 = vadd.f32 %v1135, %v1136
    %1139 = vrot.lane.b32.xlu0 %v1137, 88
    %v1140 = vpop.permute.xlu0 %1139
    %s1142 = scalar_lea.vmem [#allocation6], 32
    %1143 = vst.msk [vmem:[%s1142] sm:$0xff] %vm203, %v1140
    %v1144 = vpack.c.bf16 %v1137, %v1137
    %1146 = vrot.lane.b32.xlu0 %v1144, 88
    %v1147 = vpop.permute.xlu0 %1146
    %v1149 = vsel %vm203, %v1147, 0
    %1151 = vmatprep.subr.bf16.mxu0 0
    %1152 = vmatpush1.bf16.msra.mxu0 %v296
    %1153 = vmatprep.subr.bf16.mxu0 0
    %1154 = vmatpush1.bf16.msra.mxu0 %v297
    %1155 = vmatprep.subr.bf16.mxu0 0
    %1156 = vmatpush1.bf16.msra.mxu0 %v305
    %1157 = vmatprep.subr.bf16.mxu0 0
    %1158 = vmatpush1.bf16.msra.mxu0 0
    %1159 = vmatprep.subr.bf16.mxu0 0
    %1160 = vmatpush1.bf16.msra.mxu0 0
    %1161 = vmatprep.subr.bf16.mxu0 0
    %1162 = vmatpush1.bf16.msra.mxu0 0
    %1163 = vmatprep.subr.bf16.mxu0 0
    %1164 = vmatpush1.bf16.msra.mxu0 0
    %1165 = vmatprep.subr.bf16.mxu0 0
    %1166 = vmatpush1.bf16.msra.mxu0 0
    %1167 = vmatprep.subr.bf16.mxu0 0
    %1168 = vmatpush1.bf16.msra.mxu0 0
    %1169 = vmatprep.subr.bf16.mxu0 0
    %1170 = vmatpush1.bf16.msra.mxu0 0
    %1171 = vmatprep.subr.bf16.mxu0 0
    %1172 = vmatpush1.bf16.msra.mxu0 0
    %1173 = vmatprep.subr.bf16.mxu0 0
    %1174 = vmatpush1.bf16.msra.mxu0 0
    %1175 = vmatprep.subr.bf16.mxu0 0
    %1176 = vmatpush1.bf16.msra.mxu0 0
    %1177 = vmatprep.subr.bf16.mxu0 0
    %1178 = vmatpush1.bf16.msra.mxu0 0
    %1179 = vmatprep.subr.bf16.mxu0 0
    %1180 = vmatpush1.bf16.msra.mxu0 0
    %1181 = vmatprep.subr.bf16.mxu0 0
    %1182 = vmatpush1.bf16.msra.mxu0 0
    %1183 = vmatprep.mubr.bf16.mxu0 0
    %1184 = vmatmul.mubr.bf16.gmra.mrb[0].mxu0 %v1149
    %v1185 = vpop.f32.mrb[0].mxu0
    %v1186 = vadd.f32 0.0, %v1185
    %v1187 = vpop.f32.mrb[0].mxu0
    %v1188 = vpop.f32.mrb[0].mxu0
    %v1189 = vpop.f32.mrb[0].mxu0
    %1190 = vdwg.mxu0
    %v1191 = vpack.c.bf16 %v1053, %v1053
    %1193 = vrot.lane.b32.xlu0 %v1191, 112
    %v1194 = vpop.permute.xlu0 %1193
    %v1196 = vsel %vm353, %v1194, 0
    %1198 = vmatprep.subr.bf16.mxu0 0
    %1199 = vmatpush1.bf16.msra.mxu0 %v351
    %1200 = vmatprep.subr.bf16.mxu0 0
    %1201 = vmatpush1.bf16.msra.mxu0 0
    %1202 = vmatprep.subr.bf16.mxu0 0
    %1203 = vmatpush1.bf16.msra.mxu0 0
    %1204 = vmatprep.subr.bf16.mxu0 0
    %1205 = vmatpush1.bf16.msra.mxu0 0
    %1206 = vmatprep.subr.bf16.mxu0 0
    %1207 = vmatpush1.bf16.msra.mxu0 0
    %1208 = vmatprep.subr.bf16.mxu0 0
    %1209 = vmatpush1.bf16.msra.mxu0 0
    %1210 = vmatprep.subr.bf16.mxu0 0
    %1211 = vmatpush1.bf16.msra.mxu0 0
    %1212 = vmatprep.subr.bf16.mxu0 0
    %1213 = vmatpush1.bf16.msra.mxu0 0
    %1214 = vmatprep.subr.bf16.mxu0 0
    %1215 = vmatpush1.bf16.msra.mxu0 0
    %1216 = vmatprep.subr.bf16.mxu0 0
    %1217 = vmatpush1.bf16.msra.mxu0 0
    %1218 = vmatprep.subr.bf16.mxu0 0
    %1219 = vmatpush1.bf16.msra.mxu0 0
    %1220 = vmatprep.subr.bf16.mxu0 0
    %1221 = vmatpush1.bf16.msra.mxu0 0
    %1222 = vmatprep.subr.bf16.mxu0 0
    %1223 = vmatpush1.bf16.msra.mxu0 0
    %1224 = vmatprep.subr.bf16.mxu0 0
    %1225 = vmatpush1.bf16.msra.mxu0 0
    %1226 = vmatprep.subr.bf16.mxu0 0
    %1227 = vmatpush1.bf16.msra.mxu0 0
    %1228 = vmatprep.subr.bf16.mxu0 0
    %1229 = vmatpush1.bf16.msra.mxu0 0
    %1230 = vmatprep.mubr.bf16.mxu0 0
    %1231 = vmatmul.mubr.bf16.gmra.mrb[0].mxu0 %v1196
    %v1232 = vpop.f32.mrb[0].mxu0
    %v1233 = vadd.f32 0.0, %v1232
    %v1234 = vpop.f32.mrb[0].mxu0
    %v1235 = vpop.f32.mrb[0].mxu0
    %v1236 = vpop.f32.mrb[0].mxu0
    %1237 = vdwg.mxu0
    %v1238 = vadd.f32 %v1186, %v1233
    %v1239 = vxor.u32 %v1238, 2147483648
    %v1240 = vmul.f32 %v1239, 1.442695
    %v1241 = vpow.pop %v1240
    %v1242 = vadd.f32 %v1241, 1.0
    %v1243 = vrcp.pop %v1242
    %v1244 = vmul.f32 1.0, %v1243
    %1246 = vrot.lane.b32.xlu0 %v1233, 96
    %v1247 = vpop.permute.xlu0 %1246
    %v1249 = vmul.f32 %v1244, %v1247
    %1251 = vrot.lane.b32.xlu0 %v1249, 32
    %v1252 = vpop.permute.xlu0 %1251
    %v1254 = vadd.f32 %v1186, %v1252
    %v1255 = vtanh.pop %v1254
    %v1256 = vsub.f32 1.0, %v1244
    %1258 = vrot.lane.b32.xlu0 %v1255, 112
    %v1259 = vpop.permute.xlu0 %1258
    %v1261 = vmul.f32 %v1256, %v1259
    %v1262 = vmul.f32 %v1244, %v1053
    %v1263 = vadd.f32 %v1261, %v1262
    %1265 = vrot.lane.b32.xlu0 %v1263, 24
    %v1266 = vpop.permute.xlu0 %1265
    %1268 = vst.msk [vmem:[%s1142] sm:$0xff] %vm426, %v1266
    %v1269 = vxor.u32 %v1263, 2147483648
    %v1270 = vmul.f32 %v1269, 1.442695
    %v1271 = vpow.pop %v1270
    %v1272 = vadd.f32 %v1271, 1.0
    %v1273 = vrcp.pop %v1272
    %v1274 = vmul.f32 1.0, %v1273
    %1276 = vrot.lane.b32.xlu0 %v1274, 40
    %v1277 = vpop.permute.xlu0 %1276
    %1279 = vst.msk [vmem:[%s1142] sm:$0xff] %vm438, %v1277
    %s1280 = scalar_lea.vmem [#allocation2], 40
    %v1281 = vld [vmem:[%s1280] sm:$0xff]
    %1282 = vmatprep.subr.bf16.mxu0 0
    %1283 = vmatpush1.bf16.msra.mxu0 %v198
    %1284 = vmatprep.subr.bf16.mxu0 0
    %1285 = vmatpush1.bf16.msra.mxu0 %v199
    %1286 = vmatprep.subr.bf16.mxu0 0
    %1287 = vmatpush1.bf16.msra.mxu0 %v209
    %1288 = vmatprep.subr.bf16.mxu0 0
    %1289 = vmatpush1.bf16.msra.mxu0 0
    %1290 = vmatprep.subr.bf16.mxu0 0
    %1291 = vmatpush1.bf16.msra.mxu0 0
    %1292 = vmatprep.subr.bf16.mxu0 0
    %1293 = vmatpush1.bf16.msra.mxu0 0
    %1294 = vmatprep.subr.bf16.mxu0 0
    %1295 = vmatpush1.bf16.msra.mxu0 0
    %1296 = vmatprep.subr.bf16.mxu0 0
    %1297 = vmatpush1.bf16.msra.mxu0 0
    %1298 = vmatprep.subr.bf16.mxu0 0
    %1299 = vmatpush1.bf16.msra.mxu0 0
    %1300 = vmatprep.subr.bf16.mxu0 0
    %1301 = vmatpush1.bf16.msra.mxu0 0
    %1302 = vmatprep.subr.bf16.mxu0 0
    %1303 = vmatpush1.bf16.msra.mxu0 0
    %1304 = vmatprep.subr.bf16.mxu0 0
    %1305 = vmatpush1.bf16.msra.mxu0 0
    %1306 = vmatprep.subr.bf16.mxu0 0
    %1307 = vmatpush1.bf16.msra.mxu0 0
    %1308 = vmatprep.subr.bf16.mxu0 0
    %1309 = vmatpush1.bf16.msra.mxu0 0
    %1310 = vmatprep.subr.bf16.mxu0 0
    %1311 = vmatpush1.bf16.msra.mxu0 0
    %1312 = vmatprep.subr.bf16.mxu0 0
    %1313 = vmatpush1.bf16.msra.mxu0 0
    %1314 = vmatprep.mubr.bf16.mxu0 0
    %1315 = vmatmul.mubr.bf16.gmra.mrb[0].mxu0 %v1149
    %v1316 = vpop.f32.mrb[0].mxu0
    %v1317 = vadd.f32 0.0, %v1316
    %v1318 = vpop.f32.mrb[0].mxu0
    %v1319 = vpop.f32.mrb[0].mxu0
    %v1320 = vpop.f32.mrb[0].mxu0
    %1321 = vdwg.mxu0
    %v1322 = vadd.f32 %v1281, %v1317
    %v1323 = vxor.u32 %v1322, 2147483648
    %v1324 = vmul.f32 %v1323, 1.442695
    %v1325 = vpow.pop %v1324
    %v1326 = vadd.f32 %v1325, 1.0
    %v1327 = vrcp.pop %v1326
    %v1328 = vmul.f32 1.0, %v1327
    %1330 = vrot.lane.b32.xlu0 %v1317, 48
    %v1331 = vpop.permute.xlu0 %1330
    %v1333 = vmul.f32 %v1328, %v1331
    %1335 = vrot.lane.b32.xlu0 %v1333, 80
    %v1336 = vpop.permute.xlu0 %1335
    %v1338 = vadd.f32 %v1281, %v1336
    %v1339 = vtanh.pop %v1338
    %v1340 = vsub.f32 1.0, %v1328
    %1342 = vrot.lane.b32.xlu0 %v1339, 88
    %v1343 = vpop.permute.xlu0 %1342
    %v1345 = vmul.f32 %v1340, %v1343
    %v1346 = vmul.f32 %v1328, %v1137
    %v1347 = vadd.f32 %v1345, %v1346
    %1349 = vrot.lane.b32.xlu0 %v1347, 88
    %v1350 = vpop.permute.xlu0 %1349
    %s1352 = scalar_lea.vmem [#allocation6], 40
    %1353 = vst.msk [vmem:[%s1352] sm:$0xff] %vm203, %v1350
    %v1354 = vpack.c.bf16 %v1347, %v1347
    %1356 = vrot.lane.b32.xlu0 %v1354, 88
    %v1357 = vpop.permute.xlu0 %1356
    %v1359 = vsel %vm203, %v1357, 0
    %1361 = vmatprep.subr.bf16.mxu0 0
    %1362 = vmatpush1.bf16.msra.mxu0 %v296
    %1363 = vmatprep.subr.bf16.mxu0 0
    %1364 = vmatpush1.bf16.msra.mxu0 %v297
    %1365 = vmatprep.subr.bf16.mxu0 0
    %1366 = vmatpush1.bf16.msra.mxu0 %v305
    %1367 = vmatprep.subr.bf16.mxu0 0
    %1368 = vmatpush1.bf16.msra.mxu0 0
    %1369 = vmatprep.subr.bf16.mxu0 0
    %1370 = vmatpush1.bf16.msra.mxu0 0
    %1371 = vmatprep.subr.bf16.mxu0 0
    %1372 = vmatpush1.bf16.msra.mxu0 0
    %1373 = vmatprep.subr.bf16.mxu0 0
    %1374 = vmatpush1.bf16.msra.mxu0 0
    %1375 = vmatprep.subr.bf16.mxu0 0
    %1376 = vmatpush1.bf16.msra.mxu0 0
    %1377 = vmatprep.subr.bf16.mxu0 0
    %1378 = vmatpush1.bf16.msra.mxu0 0
    %1379 = vmatprep.subr.bf16.mxu0 0
    %1380 = vmatpush1.bf16.msra.mxu0 0
    %1381 = vmatprep.subr.bf16.mxu0 0
    %1382 = vmatpush1.bf16.msra.mxu0 0
    %1383 = vmatprep.subr.bf16.mxu0 0
    %1384 = vmatpush1.bf16.msra.mxu0 0
    %1385 = vmatprep.subr.bf16.mxu0 0
    %1386 = vmatpush1.bf16.msra.mxu0 0
    %1387 = vmatprep.subr.bf16.mxu0 0
    %1388 = vmatpush1.bf16.msra.mxu0 0
    %1389 = vmatprep.subr.bf16.mxu0 0
    %1390 = vmatpush1.bf16.msra.mxu0 0
    %1391 = vmatprep.subr.bf16.mxu0 0
    %1392 = vmatpush1.bf16.msra.mxu0 0
    %1393 = vmatprep.mubr.bf16.mxu0 0
    %1394 = vmatmul.mubr.bf16.gmra.mrb[0].mxu0 %v1359
    %v1395 = vpop.f32.mrb[0].mxu0
    %v1396 = vadd.f32 0.0, %v1395
    %v1397 = vpop.f32.mrb[0].mxu0
    %v1398 = vpop.f32.mrb[0].mxu0
    %v1399 = vpop.f32.mrb[0].mxu0
    %1400 = vdwg.mxu0
    %v1401 = vpack.c.bf16 %v1263, %v1263
    %1403 = vrot.lane.b32.xlu0 %v1401, 112
    %v1404 = vpop.permute.xlu0 %1403
    %v1406 = vsel %vm353, %v1404, 0
    %1408 = vmatprep.subr.bf16.mxu0 0
    %1409 = vmatpush1.bf16.msra.mxu0 %v351
    %1410 = vmatprep.subr.bf16.mxu0 0
    %1411 = vmatpush1.bf16.msra.mxu0 0
    %1412 = vmatprep.subr.bf16.mxu0 0
    %1413 = vmatpush1.bf16.msra.mxu0 0
    %1414 = vmatprep.subr.bf16.mxu0 0
    %1415 = vmatpush1.bf16.msra.mxu0 0
    %1416 = vmatprep.subr.bf16.mxu0 0
    %1417 = vmatpush1.bf16.msra.mxu0 0
    %1418 = vmatprep.subr.bf16.mxu0 0
    %1419 = vmatpush1.bf16.msra.mxu0 0
    %1420 = vmatprep.subr.bf16.mxu0 0
    %1421 = vmatpush1.bf16.msra.mxu0 0
    %1422 = vmatprep.subr.bf16.mxu0 0
    %1423 = vmatpush1.bf16.msra.mxu0 0
    %1424 = vmatprep.subr.bf16.mxu0 0
    %1425 = vmatpush1.bf16.msra.mxu0 0
    %1426 = vmatprep.subr.bf16.mxu0 0
    %1427 = vmatpush1.bf16.msra.mxu0 0
    %1428 = vmatprep.subr.bf16.mxu0 0
    %1429 = vmatpush1.bf16.msra.mxu0 0
    %1430 = vmatprep.subr.bf16.mxu0 0
    %1431 = vmatpush1.bf16.msra.mxu0 0
    %1432 = vmatprep.subr.bf16.mxu0 0
    %1433 = vmatpush1.bf16.msra.mxu0 0
    %1434 = vmatprep.subr.bf16.mxu0 0
    %1435 = vmatpush1.bf16.msra.mxu0 0
    %1436 = vmatprep.subr.bf16.mxu0 0
    %1437 = vmatpush1.bf16.msra.mxu0 0
    %1438 = vmatprep.subr.bf16.mxu0 0
    %1439 = vmatpush1.bf16.msra.mxu0 0
    %1440 = vmatprep.mubr.bf16.mxu0 0
    %1441 = vmatmul.mubr.bf16.gmra.mrb[0].mxu0 %v1406
    %v1442 = vpop.f32.mrb[0].mxu0
    %v1443 = vadd.f32 0.0, %v1442
    %v1444 = vpop.f32.mrb[0].mxu0
    %v1445 = vpop.f32.mrb[0].mxu0
    %v1446 = vpop.f32.mrb[0].mxu0
    %1447 = vdwg.mxu0
    %v1448 = vadd.f32 %v1396, %v1443
    %v1449 = vxor.u32 %v1448, 2147483648
    %v1450 = vmul.f32 %v1449, 1.442695
    %v1451 = vpow.pop %v1450
    %v1452 = vadd.f32 %v1451, 1.0
    %v1453 = vrcp.pop %v1452
    %v1454 = vmul.f32 1.0, %v1453
    %1456 = vrot.lane.b32.xlu0 %v1443, 96
    %v1457 = vpop.permute.xlu0 %1456
    %v1459 = vmul.f32 %v1454, %v1457
    %1461 = vrot.lane.b32.xlu0 %v1459, 32
    %v1462 = vpop.permute.xlu0 %1461
    %v1464 = vadd.f32 %v1396, %v1462
    %v1465 = vtanh.pop %v1464
    %v1466 = vsub.f32 1.0, %v1454
    %1468 = vrot.lane.b32.xlu0 %v1465, 112
    %v1469 = vpop.permute.xlu0 %1468
    %v1471 = vmul.f32 %v1466, %v1469
    %v1472 = vmul.f32 %v1454, %v1263
    %v1473 = vadd.f32 %v1471, %v1472
    %1475 = vrot.lane.b32.xlu0 %v1473, 24
    %v1476 = vpop.permute.xlu0 %1475
    %1478 = vst.msk [vmem:[%s1352] sm:$0xff] %vm426, %v1476
    %v1479 = vxor.u32 %v1473, 2147483648
    %v1480 = vmul.f32 %v1479, 1.442695
    %v1481 = vpow.pop %v1480
    %v1482 = vadd.f32 %v1481, 1.0
    %v1483 = vrcp.pop %v1482
    %v1484 = vmul.f32 1.0, %v1483
    %1486 = vrot.lane.b32.xlu0 %v1484, 40
    %v1487 = vpop.permute.xlu0 %1486
    %1489 = vst.msk [vmem:[%s1352] sm:$0xff] %vm438, %v1487
    %s1490 = scalar_lea.vmem [#allocation2], 48
    %v1491 = vld [vmem:[%s1490] sm:$0xff]
    %1492 = vmatprep.subr.bf16.mxu0 0
    %1493 = vmatpush1.bf16.msra.mxu0 %v198
    %1494 = vmatprep.subr.bf16.mxu0 0
    %1495 = vmatpush1.bf16.msra.mxu0 %v199
    %1496 = vmatprep.subr.bf16.mxu0 0
    %1497 = vmatpush1.bf16.msra.mxu0 %v209
    %1498 = vmatprep.subr.bf16.mxu0 0
    %1499 = vmatpush1.bf16.msra.mxu0 0
    %1500 = vmatprep.subr.bf16.mxu0 0
    %1501 = vmatpush1.bf16.msra.mxu0 0
    %1502 = vmatprep.subr.bf16.mxu0 0
    %1503 = vmatpush1.bf16.msra.mxu0 0
    %1504 = vmatprep.subr.bf16.mxu0 0
    %1505 = vmatpush1.bf16.msra.mxu0 0
    %1506 = vmatprep.subr.bf16.mxu0 0
    %1507 = vmatpush1.bf16.msra.mxu0 0
    %1508 = vmatprep.subr.bf16.mxu0 0
    %1509 = vmatpush1.bf16.msra.mxu0 0
    %1510 = vmatprep.subr.bf16.mxu0 0
    %1511 = vmatpush1.bf16.msra.mxu0 0
    %1512 = vmatprep.subr.bf16.mxu0 0
    %1513 = vmatpush1.bf16.msra.mxu0 0
    %1514 = vmatprep.subr.bf16.mxu0 0
    %1515 = vmatpush1.bf16.msra.mxu0 0
    %1516 = vmatprep.subr.bf16.mxu0 0
    %1517 = vmatpush1.bf16.msra.mxu0 0
    %1518 = vmatprep.subr.bf16.mxu0 0
    %1519 = vmatpush1.bf16.msra.mxu0 0
    %1520 = vmatprep.subr.bf16.mxu0 0
    %1521 = vmatpush1.bf16.msra.mxu0 0
    %1522 = vmatprep.subr.bf16.mxu0 0
    %1523 = vmatpush1.bf16.msra.mxu0 0
    %1524 = vmatprep.mubr.bf16.mxu0 0
    %1525 = vmatmul.mubr.bf16.gmra.mrb[0].mxu0 %v1359
    %v1526 = vpop.f32.mrb[0].mxu0
    %v1527 = vadd.f32 0.0, %v1526
    %v1528 = vpop.f32.mrb[0].mxu0
    %v1529 = vpop.f32.mrb[0].mxu0
    %v1530 = vpop.f32.mrb[0].mxu0
    %1531 = vdwg.mxu0
    %v1532 = vadd.f32 %v1491, %v1527
    %v1533 = vxor.u32 %v1532, 2147483648
    %v1534 = vmul.f32 %v1533, 1.442695
    %v1535 = vpow.pop %v1534
    %v1536 = vadd.f32 %v1535, 1.0
    %v1537 = vrcp.pop %v1536
    %v1538 = vmul.f32 1.0, %v1537
    %1540 = vrot.lane.b32.xlu0 %v1527, 48
    %v1541 = vpop.permute.xlu0 %1540
    %v1543 = vmul.f32 %v1538, %v1541
    %1545 = vrot.lane.b32.xlu0 %v1543, 80
    %v1546 = vpop.permute.xlu0 %1545
    %v1548 = vadd.f32 %v1491, %v1546
    %v1549 = vtanh.pop %v1548
    %v1550 = vsub.f32 1.0, %v1538
    %1552 = vrot.lane.b32.xlu0 %v1549, 88
    %v1553 = vpop.permute.xlu0 %1552
    %v1555 = vmul.f32 %v1550, %v1553
    %v1556 = vmul.f32 %v1538, %v1347
    %v1557 = vadd.f32 %v1555, %v1556
    %1559 = vrot.lane.b32.xlu0 %v1557, 88
    %v1560 = vpop.permute.xlu0 %1559
    %s1562 = scalar_lea.vmem [#allocation6], 48
    %1563 = vst.msk [vmem:[%s1562] sm:$0xff] %vm203, %v1560
    %v1564 = vpack.c.bf16 %v1557, %v1557
    %1566 = vrot.lane.b32.xlu0 %v1564, 88
    %v1567 = vpop.permute.xlu0 %1566
    %v1569 = vsel %vm203, %v1567, 0
    %1571 = vmatprep.subr.bf16.mxu0 0
    %1572 = vmatpush1.bf16.msra.mxu0 %v296
    %1573 = vmatprep.subr.bf16.mxu0 0
    %1574 = vmatpush1.bf16.msra.mxu0 %v297
    %1575 = vmatprep.subr.bf16.mxu0 0
    %1576 = vmatpush1.bf16.msra.mxu0 %v305
    %1577 = vmatprep.subr.bf16.mxu0 0
    %1578 = vmatpush1.bf16.msra.mxu0 0
    %1579 = vmatprep.subr.bf16.mxu0 0
    %1580 = vmatpush1.bf16.msra.mxu0 0
    %1581 = vmatprep.subr.bf16.mxu0 0
    %1582 = vmatpush1.bf16.msra.mxu0 0
    %1583 = vmatprep.subr.bf16.mxu0 0
    %1584 = vmatpush1.bf16.msra.mxu0 0
    %1585 = vmatprep.subr.bf16.mxu0 0
    %1586 = vmatpush1.bf16.msra.mxu0 0
    %1587 = vmatprep.subr.bf16.mxu0 0
    %1588 = vmatpush1.bf16.msra.mxu0 0
    %1589 = vmatprep.subr.bf16.mxu0 0
    %1590 = vmatpush1.bf16.msra.mxu0 0
    %1591 = vmatprep.subr.bf16.mxu0 0
    %1592 = vmatpush1.bf16.msra.mxu0 0
    %1593 = vmatprep.subr.bf16.mxu0 0
    %1594 = vmatpush1.bf16.msra.mxu0 0
    %1595 = vmatprep.subr.bf16.mxu0 0
    %1596 = vmatpush1.bf16.msra.mxu0 0
    %1597 = vmatprep.subr.bf16.mxu0 0
    %1598 = vmatpush1.bf16.msra.mxu0 0
    %1599 = vmatprep.subr.bf16.mxu0 0
    %1600 = vmatpush1.bf16.msra.mxu0 0
    %1601 = vmatprep.subr.bf16.mxu0 0
    %1602 = vmatpush1.bf16.msra.mxu0 0
    %1603 = vmatprep.mubr.bf16.mxu0 0
    %1604 = vmatmul.mubr.bf16.gmra.mrb[0].mxu0 %v1569
    %v1605 = vpop.f32.mrb[0].mxu0
    %v1606 = vadd.f32 0.0, %v1605
    %v1607 = vpop.f32.mrb[0].mxu0
    %v1608 = vpop.f32.mrb[0].mxu0
    %v1609 = vpop.f32.mrb[0].mxu0
    %1610 = vdwg.mxu0
    %v1611 = vpack.c.bf16 %v1473, %v1473
    %1613 = vrot.lane.b32.xlu0 %v1611, 112
    %v1614 = vpop.permute.xlu0 %1613
    %v1616 = vsel %vm353, %v1614, 0
    %1618 = vmatprep.subr.bf16.mxu0 0
    %1619 = vmatpush1.bf16.msra.mxu0 %v351
    %1620 = vmatprep.subr.bf16.mxu0 0
    %1621 = vmatpush1.bf16.msra.mxu0 0
    %1622 = vmatprep.subr.bf16.mxu0 0
    %1623 = vmatpush1.bf16.msra.mxu0 0
    %1624 = vmatprep.subr.bf16.mxu0 0
    %1625 = vmatpush1.bf16.msra.mxu0 0
    %1626 = vmatprep.subr.bf16.mxu0 0
    %1627 = vmatpush1.bf16.msra.mxu0 0
    %1628 = vmatprep.subr.bf16.mxu0 0
    %1629 = vmatpush1.bf16.msra.mxu0 0
    %1630 = vmatprep.subr.bf16.mxu0 0
    %1631 = vmatpush1.bf16.msra.mxu0 0
    %1632 = vmatprep.subr.bf16.mxu0 0
    %1633 = vmatpush1.bf16.msra.mxu0 0
    %1634 = vmatprep.subr.bf16.mxu0 0
    %1635 = vmatpush1.bf16.msra.mxu0 0
    %1636 = vmatprep.subr.bf16.mxu0 0
    %1637 = vmatpush1.bf16.msra.mxu0 0
    %1638 = vmatprep.subr.bf16.mxu0 0
    %1639 = vmatpush1.bf16.msra.mxu0 0
    %1640 = vmatprep.subr.bf16.mxu0 0
    %1641 = vmatpush1.bf16.msra.mxu0 0
    %1642 = vmatprep.subr.bf16.mxu0 0
    %1643 = vmatpush1.bf16.msra.mxu0 0
    %1644 = vmatprep.subr.bf16.mxu0 0
    %1645 = vmatpush1.bf16.msra.mxu0 0
    %1646 = vmatprep.subr.bf16.mxu0 0
    %1647 = vmatpush1.bf16.msra.mxu0 0
    %1648 = vmatprep.subr.bf16.mxu0 0
    %1649 = vmatpush1.bf16.msra.mxu0 0
    %1650 = vmatprep.mubr.bf16.mxu0 0
    %1651 = vmatmul.mubr.bf16.gmra.mrb[0].mxu0 %v1616
    %v1652 = vpop.f32.mrb[0].mxu0
    %v1653 = vadd.f32 0.0, %v1652
    %v1654 = vpop.f32.mrb[0].mxu0
    %v1655 = vpop.f32.mrb[0].mxu0
    %v1656 = vpop.f32.mrb[0].mxu0
    %1657 = vdwg.mxu0
    %v1658 = vadd.f32 %v1606, %v1653
    %v1659 = vxor.u32 %v1658, 2147483648
    %v1660 = vmul.f32 %v1659, 1.442695
    %v1661 = vpow.pop %v1660
    %v1662 = vadd.f32 %v1661, 1.0
    %v1663 = vrcp.pop %v1662
    %v1664 = vmul.f32 1.0, %v1663
    %1666 = vrot.lane.b32.xlu0 %v1653, 96
    %v1667 = vpop.permute.xlu0 %1666
    %v1669 = vmul.f32 %v1664, %v1667
    %1671 = vrot.lane.b32.xlu0 %v1669, 32
    %v1672 = vpop.permute.xlu0 %1671
    %v1674 = vadd.f32 %v1606, %v1672
    %v1675 = vtanh.pop %v1674
    %v1676 = vsub.f32 1.0, %v1664
    %1678 = vrot.lane.b32.xlu0 %v1675, 112
    %v1679 = vpop.permute.xlu0 %1678
    %v1681 = vmul.f32 %v1676, %v1679
    %v1682 = vmul.f32 %v1664, %v1473
    %v1683 = vadd.f32 %v1681, %v1682
    %1685 = vrot.lane.b32.xlu0 %v1683, 24
    %v1686 = vpop.permute.xlu0 %1685
    %1688 = vst.msk [vmem:[%s1562] sm:$0xff] %vm426, %v1686
    %v1689 = vxor.u32 %v1683, 2147483648
    %v1690 = vmul.f32 %v1689, 1.442695
    %v1691 = vpow.pop %v1690
    %v1692 = vadd.f32 %v1691, 1.0
    %v1693 = vrcp.pop %v1692
    %v1694 = vmul.f32 1.0, %v1693
    %1696 = vrot.lane.b32.xlu0 %v1694, 40
    %v1697 = vpop.permute.xlu0 %1696
    %1699 = vst.msk [vmem:[%s1562] sm:$0xff] %vm438, %v1697
    %s1700 = scalar_lea.vmem [#allocation2], 56
    %v1701 = vld [vmem:[%s1700] sm:$0xff]
    %1702 = vmatprep.subr.bf16.mxu0 0
    %1703 = vmatpush1.bf16.msra.mxu0 %v198
    %1704 = vmatprep.subr.bf16.mxu0 0
    %1705 = vmatpush1.bf16.msra.mxu0 %v199
    %1706 = vmatprep.subr.bf16.mxu0 0
    %1707 = vmatpush1.bf16.msra.mxu0 %v209
    %1708 = vmatprep.subr.bf16.mxu0 0
    %1709 = vmatpush1.bf16.msra.mxu0 0
    %1710 = vmatprep.subr.bf16.mxu0 0
    %1711 = vmatpush1.bf16.msra.mxu0 0
    %1712 = vmatprep.subr.bf16.mxu0 0
    %1713 = vmatpush1.bf16.msra.mxu0 0
    %1714 = vmatprep.subr.bf16.mxu0 0
    %1715 = vmatpush1.bf16.msra.mxu0 0
    %1716 = vmatprep.subr.bf16.mxu0 0
    %1717 = vmatpush1.bf16.msra.mxu0 0
    %1718 = vmatprep.subr.bf16.mxu0 0
    %1719 = vmatpush1.bf16.msra.mxu0 0
    %1720 = vmatprep.subr.bf16.mxu0 0
    %1721 = vmatpush1.bf16.msra.mxu0 0
    %1722 = vmatprep.subr.bf16.mxu0 0
    %1723 = vmatpush1.bf16.msra.mxu0 0
    %1724 = vmatprep.subr.bf16.mxu0 0
    %1725 = vmatpush1.bf16.msra.mxu0 0
    %1726 = vmatprep.subr.bf16.mxu0 0
    %1727 = vmatpush1.bf16.msra.mxu0 0
    %1728 = vmatprep.subr.bf16.mxu0 0
    %1729 = vmatpush1.bf16.msra.mxu0 0
    %1730 = vmatprep.subr.bf16.mxu0 0
    %1731 = vmatpush1.bf16.msra.mxu0 0
    %1732 = vmatprep.subr.bf16.mxu0 0
    %1733 = vmatpush1.bf16.msra.mxu0 0
    %1734 = vmatprep.mubr.bf16.mxu0 0
    %1735 = vmatmul.mubr.bf16.gmra.mrb[0].mxu0 %v1569
    %v1736 = vpop.f32.mrb[0].mxu0
    %v1737 = vadd.f32 0.0, %v1736
    %v1738 = vpop.f32.mrb[0].mxu0
    %v1739 = vpop.f32.mrb[0].mxu0
    %v1740 = vpop.f32.mrb[0].mxu0
    %1741 = vdwg.mxu0
    %v1742 = vadd.f32 %v1701, %v1737
    %v1743 = vxor.u32 %v1742, 2147483648
    %v1744 = vmul.f32 %v1743, 1.442695
    %v1745 = vpow.pop %v1744
    %v1746 = vadd.f32 %v1745, 1.0
    %v1747 = vrcp.pop %v1746
    %v1748 = vmul.f32 1.0, %v1747
    %1750 = vrot.lane.b32.xlu0 %v1737, 48
    %v1751 = vpop.permute.xlu0 %1750
    %v1753 = vmul.f32 %v1748, %v1751
    %1755 = vrot.lane.b32.xlu0 %v1753, 80
    %v1756 = vpop.permute.xlu0 %1755
    %v1758 = vadd.f32 %v1701, %v1756
    %v1759 = vtanh.pop %v1758
    %v1760 = vsub.f32 1.0, %v1748
    %1762 = vrot.lane.b32.xlu0 %v1759, 88
    %v1763 = vpop.permute.xlu0 %1762
    %v1765 = vmul.f32 %v1760, %v1763
    %v1766 = vmul.f32 %v1748, %v1557
    %v1767 = vadd.f32 %v1765, %v1766
    %1769 = vrot.lane.b32.xlu0 %v1767, 88
    %v1770 = vpop.permute.xlu0 %1769
    %s1772 = scalar_lea.vmem [#allocation6], 56
    %1773 = vst.msk [vmem:[%s1772] sm:$0xff] %vm203, %v1770
    %v1774 = vpack.c.bf16 %v1767, %v1767
    %1776 = vrot.lane.b32.xlu0 %v1774, 88
    %v1777 = vpop.permute.xlu0 %1776
    %v1779 = vsel %vm203, %v1777, 0
    %1781 = vmatprep.subr.bf16.mxu0 0
    %1782 = vmatpush1.bf16.msra.mxu0 %v296
    %1783 = vmatprep.subr.bf16.mxu0 0
    %1784 = vmatpush1.bf16.msra.mxu0 %v297
    %1785 = vmatprep.subr.bf16.mxu0 0
    %1786 = vmatpush1.bf16.msra.mxu0 %v305
    %1787 = vmatprep.subr.bf16.mxu0 0
    %1788 = vmatpush1.bf16.msra.mxu0 0
    %1789 = vmatprep.subr.bf16.mxu0 0
    %1790 = vmatpush1.bf16.msra.mxu0 0
    %1791 = vmatprep.subr.bf16.mxu0 0
    %1792 = vmatpush1.bf16.msra.mxu0 0
    %1793 = vmatprep.subr.bf16.mxu0 0
    %1794 = vmatpush1.bf16.msra.mxu0 0
    %1795 = vmatprep.subr.bf16.mxu0 0
    %1796 = vmatpush1.bf16.msra.mxu0 0
    %1797 = vmatprep.subr.bf16.mxu0 0
    %1798 = vmatpush1.bf16.msra.mxu0 0
    %1799 = vmatprep.subr.bf16.mxu0 0
    %1800 = vmatpush1.bf16.msra.mxu0 0
    %1801 = vmatprep.subr.bf16.mxu0 0
    %1802 = vmatpush1.bf16.msra.mxu0 0
    %1803 = vmatprep.subr.bf16.mxu0 0
    %1804 = vmatpush1.bf16.msra.mxu0 0
    %1805 = vmatprep.subr.bf16.mxu0 0
    %1806 = vmatpush1.bf16.msra.mxu0 0
    %1807 = vmatprep.subr.bf16.mxu0 0
    %1808 = vmatpush1.bf16.msra.mxu0 0
    %1809 = vmatprep.subr.bf16.mxu0 0
    %1810 = vmatpush1.bf16.msra.mxu0 0
    %1811 = vmatprep.subr.bf16.mxu0 0
    %1812 = vmatpush1.bf16.msra.mxu0 0
    %1813 = vmatprep.mubr.bf16.mxu0 0
    %1814 = vmatmul.mubr.bf16.gmra.mrb[0].mxu0 %v1779
    %v1815 = vpop.f32.mrb[0].mxu0
    %v1816 = vadd.f32 0.0, %v1815
    %v1817 = vpop.f32.mrb[0].mxu0
    %v1818 = vpop.f32.mrb[0].mxu0
    %v1819 = vpop.f32.mrb[0].mxu0
    %1820 = vdwg.mxu0
    %v1821 = vpack.c.bf16 %v1683, %v1683
    %1823 = vrot.lane.b32.xlu0 %v1821, 112
    %v1824 = vpop.permute.xlu0 %1823
    %v1826 = vsel %vm353, %v1824, 0
    %1828 = vmatprep.subr.bf16.mxu0 0
    %1829 = vmatpush1.bf16.msra.mxu0 %v351
    %1830 = vmatprep.subr.bf16.mxu0 0
    %1831 = vmatpush1.bf16.msra.mxu0 0
    %1832 = vmatprep.subr.bf16.mxu0 0
    %1833 = vmatpush1.bf16.msra.mxu0 0
    %1834 = vmatprep.subr.bf16.mxu0 0
    %1835 = vmatpush1.bf16.msra.mxu0 0
    %1836 = vmatprep.subr.bf16.mxu0 0
    %1837 = vmatpush1.bf16.msra.mxu0 0
    %1838 = vmatprep.subr.bf16.mxu0 0
    %1839 = vmatpush1.bf16.msra.mxu0 0
    %1840 = vmatprep.subr.bf16.mxu0 0
    %1841 = vmatpush1.bf16.msra.mxu0 0
    %1842 = vmatprep.subr.bf16.mxu0 0
    %1843 = vmatpush1.bf16.msra.mxu0 0
    %1844 = vmatprep.subr.bf16.mxu0 0
    %1845 = vmatpush1.bf16.msra.mxu0 0
    %1846 = vmatprep.subr.bf16.mxu0 0
    %1847 = vmatpush1.bf16.msra.mxu0 0
    %1848 = vmatprep.subr.bf16.mxu0 0
    %1849 = vmatpush1.bf16.msra.mxu0 0
    %1850 = vmatprep.subr.bf16.mxu0 0
    %1851 = vmatpush1.bf16.msra.mxu0 0
    %1852 = vmatprep.subr.bf16.mxu0 0
    %1853 = vmatpush1.bf16.msra.mxu0 0
    %1854 = vmatprep.subr.bf16.mxu0 0
    %1855 = vmatpush1.bf16.msra.mxu0 0
    %1856 = vmatprep.subr.bf16.mxu0 0
    %1857 = vmatpush1.bf16.msra.mxu0 0
    %1858 = vmatprep.subr.bf16.mxu0 0
    %1859 = vmatpush1.bf16.msra.mxu0 0
    %1860 = vmatprep.mubr.bf16.mxu0 0
    %1861 = vmatmul.mubr.bf16.gmra.mrb[0].mxu0 %v1826
    %v1862 = vpop.f32.mrb[0].mxu0
    %v1863 = vadd.f32 0.0, %v1862
    %v1864 = vpop.f32.mrb[0].mxu0
    %v1865 = vpop.f32.mrb[0].mxu0
    %v1866 = vpop.f32.mrb[0].mxu0
    %1867 = vdwg.mxu0
    %v1868 = vadd.f32 %v1816, %v1863
    %v1869 = vxor.u32 %v1868, 2147483648
    %v1870 = vmul.f32 %v1869, 1.442695
    %v1871 = vpow.pop %v1870
    %v1872 = vadd.f32 %v1871, 1.0
    %v1873 = vrcp.pop %v1872
    %v1874 = vmul.f32 1.0, %v1873
    %1876 = vrot.lane.b32.xlu0 %v1863, 96
    %v1877 = vpop.permute.xlu0 %1876
    %v1879 = vmul.f32 %v1874, %v1877
    %1881 = vrot.lane.b32.xlu0 %v1879, 32
    %v1882 = vpop.permute.xlu0 %1881
    %v1884 = vadd.f32 %v1816, %v1882
    %v1885 = vtanh.pop %v1884
    %v1886 = vsub.f32 1.0, %v1874
    %1888 = vrot.lane.b32.xlu0 %v1885, 112
    %v1889 = vpop.permute.xlu0 %1888
    %v1891 = vmul.f32 %v1886, %v1889
    %v1892 = vmul.f32 %v1874, %v1683
    %v1893 = vadd.f32 %v1891, %v1892
    %1895 = vrot.lane.b32.xlu0 %v1893, 24
    %v1896 = vpop.permute.xlu0 %1895
    %1898 = vst.msk [vmem:[%s1772] sm:$0xff] %vm426, %v1896
    %v1899 = vxor.u32 %v1893, 2147483648
    %v1900 = vmul.f32 %v1899, 1.442695
    %v1901 = vpow.pop %v1900
    %v1902 = vadd.f32 %v1901, 1.0
    %v1903 = vrcp.pop %v1902
    %v1904 = vmul.f32 1.0, %v1903
    %1906 = vrot.lane.b32.xlu0 %v1904, 40
    %v1907 = vpop.permute.xlu0 %1906
    %1909 = vst.msk [vmem:[%s1772] sm:$0xff] %vm438, %v1907
    // Predicated region
    $region26: #{tpu_custom_call.1} parent=1 // pred_check
      _
    $region27: #{tpu_custom_call.1} parent=1 // pred_check_branch
      %1911 = sbr.rel (0) target = $region29
    $region28: #{tpu_custom_call.1} parent=1 // pred_region
      %s1913 = ssub.s32 1024, 1024
      %1914 = vsyncadd [#allocation5], %s1913
      %s1915 = sshll.u32 [#allocation6], 4
      %s1916 = int_to_ptr.vmem [resolvable:$true] %s1915
      %1921 = dma.vmem_to_hbm [thread:$0]  %s1916, 1024, %s5, [#allocation5], 128, 128, 8
    $region29: #{tpu_custom_call.1} parent=1 // pred_fallthru
      _
    // Predicated region
    $region30: #{tpu_custom_call.1} parent=1 // pred_check
      _
    $region31: #{tpu_custom_call.1} parent=1 // pred_check_branch
      %1923 = sbr.rel (0) target = $region33
    $region32: #{tpu_custom_call.1} parent=1 // pred_region
      %1924 = dma.done [#allocation5], 1024
    $region33: #{tpu_custom_call.1} parent=1 // pred_fallthru
      _
    %1925 = vsyncpa [#allocation4], 1
    %1926 = vsyncpa [#allocation5], 1

</llo_original>
